<compile_context>
chip_gen: v7x
topology: tpu7x:2x2x1
jax: 0.10.0
libtpu: 0.0.40
codegen_flags: <defaults>
</compile_context>

<pallas_src>
import functools

import jax
import jax.numpy as jnp
from jax import lax
from jax.experimental import pallas as pl
from jax.experimental.pallas import tpu as pltpu


def _boundary_masks(H, W):
    """(1, H*W) boolean masks reproducing zero-padding for each 3x3 tap shift."""
    HW = H * W
    p = lax.broadcasted_iota(jnp.int32, (1, HW), 1)                   # flat idx
    col = lax.broadcasted_iota(jnp.int32, (1, H, W), 2).reshape(1, HW)
    row_ok = {-1: p >= W, 0: None, 1: p < (H - 1) * W}
    col_ok = {-1: col >= 1, 0: None, 1: col <= W - 2}
    masks = {}
    for sy in (-1, 0, 1):
        for sx in (-1, 0, 1):
            r, c = row_ok[sy], col_ok[sx]
            if r is None:
                masks[(sy, sx)] = c
            elif c is None:
                masks[(sy, sx)] = r
            else:
                masks[(sy, sx)] = jnp.logical_and(r, c)
    return masks


def _conv3x3_relu(a, w_ref, b_ref, masks, W):
    """3x3 conv (pad=1) + bias + ReLU on a lane-dense (C_in, H*W) activation.

    a:     (C_in, H*W) activation
    w_ref: (9, C_out, C_in) per-tap weights, tap index = ky*3 + kx
    b_ref: (C_out, 1)
    Returns (C_out, H*W) float32.
    """
    _, HW = a.shape
    Cout = w_ref.shape[1]
    acc = jnp.zeros((Cout, HW), jnp.float32)
    tap = 0
    for sy in (-1, 0, 1):
        for sx in (-1, 0, 1):
            shift = sy * W + sx
            # tap[p] = a[p + shift] with zero-padding semantics at the border.
            t = a if shift == 0 else pltpu.roll(a, shift=(-shift) % HW, axis=1)
            m = masks[(sy, sx)]
            if m is not None:
                t = jnp.where(m, t, jnp.zeros_like(t))
            acc = acc + jnp.dot(w_ref[tap], t,
                                preferred_element_type=jnp.float32)
            tap += 1
    return jnp.maximum(acc + b_ref[...].astype(jnp.float32), 0.0)


def fused_block_kernel(x_ref, w1_ref, b1_ref, w2_ref, b2_ref, o_ref, *, H, W):
    # x_ref:  (1, Cin,  H*W)   lane-dense input (one image per grid step)
    # w1_ref: (9, Cmid, Cin)   per-tap conv1 weights
    # b1_ref: (Cmid, 1)
    # w2_ref: (9, Cout, Cmid)  per-tap conv2 weights
    # b2_ref: (Cout, 1)
    # o_ref:  (1, Cout, H*W)   lane-dense output
    masks = _boundary_masks(H, W)          # built once, shared by both convs
    x = x_ref[0]                                              # (Cin, H*W)
    h = _conv3x3_relu(x, w1_ref, b1_ref, masks, W)            # (Cmid, H*W) f32
    h = h.astype(x.dtype)        # keep conv2 MXU operands in the input dtype
    out = _conv3x3_relu(h, w2_ref, b2_ref, masks, W)          # (Cout, H*W) f32
    o_ref[0] = out.astype(o_ref.dtype)


def block_forward(x_nchw, params):
    """Forward pass of `Block` (batch_norm=False). Input/output are NCHW."""
    N, Cin, H, W = x_nchw.shape
    w1, b1 = params["w1"], params["b1"]
    w2, b2 = params["w2"], params["b2"]
    Cmid = w1.shape[1]
    Cout = w2.shape[1]
    HW = H * W

    # Lane-dense input: free reshape (NCHW is contiguous in (H, W)).
    x_flat = x_nchw.reshape(N, Cin, HW)

    out_flat = pl.pallas_call(
        functools.partial(fused_block_kernel, H=H, W=W),
        out_shape=jax.ShapeDtypeStruct((N, Cout, HW), x_nchw.dtype),
        grid=(N,),
        in_specs=[
            pl.BlockSpec((1, Cin, HW), lambda n: (n, 0, 0)),
            pl.BlockSpec((9, Cmid, Cin), lambda n: (0, 0, 0)),
            pl.BlockSpec((Cmid, 1), lambda n: (0, 0)),
            pl.BlockSpec((9, Cout, Cmid), lambda n: (0, 0, 0)),
            pl.BlockSpec((Cout, 1), lambda n: (0, 0)),
        ],
        out_specs=pl.BlockSpec((1, Cout, HW), lambda n: (n, 0, 0)),
        compiler_params=pltpu.CompilerParams(
            dimension_semantics=("parallel",)),
    )(x_flat, w1, b1, w2, b2)

    # (N, Cout, H*W) -> (N, Cout, H, W): contiguous, i.e. a free reshape.
    return out_flat.reshape(N, Cout, H, W)


def _prep_weight(w_oihw):
    """OIHW -> (9, O, I); tap index = ky*3 + kx, matching the kernel tap loop."""
    O, I, KH, KW = w_oihw.shape
    return jnp.transpose(w_oihw, (2, 3, 0, 1)).reshape(KH * KW, O, I)


def init_block_params(key, in_channels, mid_channels, out_channels,
                      dtype=jnp.float32):
    """Deterministic parameter init; shapes match torch.nn.Conv2d (OIHW/bias)."""
    k1, k2, k3, k4 = jax.random.split(key, 4)
    w1_oihw = jax.random.normal(k1, (mid_channels, in_channels, 3, 3), dtype) * 0.1
    b1 = jax.random.normal(k2, (mid_channels,), dtype) * 0.1
    w2_oihw = jax.random.normal(k3, (out_channels, mid_channels, 3, 3), dtype) * 0.1
    b2 = jax.random.normal(k4, (out_channels,), dtype) * 0.1
    return {
        # Kernel-ready layouts.
        "w1": _prep_weight(w1_oihw),          # (9, Cmid, Cin)
        "b1": b1.reshape(mid_channels, 1),    # (Cmid, 1)
        "w2": _prep_weight(w2_oihw),          # (9, Cout, Cmid)
        "b2": b2.reshape(out_channels, 1),    # (Cout, 1)
        # PyTorch-convention copies for the reference check.
        "w1_oihw": w1_oihw, "b1_vec": b1,
        "w2_oihw": w2_oihw, "b2_vec": b2,
    }


def _reference_block(x_nchw, params):
    """Pure-JAX reference (lax conv, NCHW) for correctness checking."""
    def conv(x, w_oihw, b):
        y = jax.lax.conv_general_dilated(
            x, w_oihw, window_strides=(1, 1), padding=((1, 1), (1, 1)),
            dimension_numbers=("NCHW", "OIHW", "NCHW"))
        return jax.nn.relu(y + b[None, :, None, None])
    y = conv(x_nchw, params["w1_oihw"], params["b1_vec"])
    return conv(y, params["w2_oihw"], params["b2_vec"])


if __name__ == "__main__":
    key = jax.random.PRNGKey(0)
    k_x, k_p = jax.random.split(key)

    N, Cin, H, W = 2, 4, 16, 16
    Cmid, Cout = 8, 8

    x = jax.random.normal(k_x, (N, Cin, H, W), jnp.float32)
    params = init_block_params(k_p, Cin, Cmid, Cout)

    out = jax.block_until_ready(block_forward(x, params))
    ref = jax.block_until_ready(_reference_block(x, params))

    assert out.shape == (N, Cout, H, W), out.shape
    assert jnp.allclose(out, ref, atol=1e-4, rtol=1e-4), "mismatch vs reference"

    print("KERNEL_OK")
</pallas_src>

<mosaic_0001>
module attributes {stable_mosaic.version = 11 : i64} {
  func.func @fused_block_kernel(%arg0: i32, %arg1: memref<1x4x256xf32, #tpu.memory_space<vmem>>, %arg2: memref<9x8x4xf32, #tpu.memory_space<vmem>>, %arg3: memref<8x1xf32, #tpu.memory_space<vmem>>, %arg4: memref<9x8x8xf32, #tpu.memory_space<vmem>>, %arg5: memref<8x1xf32, #tpu.memory_space<vmem>>, %arg6: memref<1x8x256xf32, #tpu.memory_space<vmem>>) attributes {dimension_semantics = [#tpu.dimension_semantics<parallel>], iteration_bounds = array<i64: 2>, scalar_prefetch = 0 : i64, scratch_operands = 0 : i64, tpu.core_type = #tpu.core_type<tc>, window_params = [{transform_indices = @transform_0, window_bounds = array<i64: 1, 4, 256>}, {pipeline_mode = #tpu.pipeline_mode<synchronous>, transform_indices = @transform_1, window_bounds = array<i64: 9, 8, 4>}, {pipeline_mode = #tpu.pipeline_mode<synchronous>, transform_indices = @transform_2, window_bounds = array<i64: 8, 1>}, {pipeline_mode = #tpu.pipeline_mode<synchronous>, transform_indices = @transform_3, window_bounds = array<i64: 9, 8, 8>}, {pipeline_mode = #tpu.pipeline_mode<synchronous>, transform_indices = @transform_4, window_bounds = array<i64: 8, 1>}, {transform_indices = @transform_5, window_bounds = array<i64: 1, 8, 256>}]} {
    %0 = tpu.iota {dimensions = array<i32: 1>} : vector<1x256xi32>
    %1 = tpu.iota {dimensions = array<i32: 2>} : vector<1x16x16xi32>
    %2 = vector.shape_cast %1 : vector<1x16x16xi32> to vector<1x256xi32>
    %c16_i32 = arith.constant 16 : i32
    %3 = vector.broadcast %c16_i32 : i32 to vector<1x256xi32>
    %4 = arith.cmpi sge, %0, %3 : vector<1x256xi32>
    %c240_i32 = arith.constant 240 : i32
    %5 = vector.broadcast %c240_i32 : i32 to vector<1x256xi32>
    %6 = arith.cmpi slt, %0, %5 : vector<1x256xi32>
    %c1_i32 = arith.constant 1 : i32
    %7 = vector.broadcast %c1_i32 : i32 to vector<1x256xi32>
    %8 = arith.cmpi sge, %2, %7 : vector<1x256xi32>
    %c14_i32 = arith.constant 14 : i32
    %9 = vector.broadcast %c14_i32 : i32 to vector<1x256xi32>
    %10 = arith.cmpi sle, %2, %9 : vector<1x256xi32>
    %11 = arith.andi %4, %8 : vector<1x256xi1>
    %12 = arith.andi %4, %10 : vector<1x256xi1>
    %13 = arith.andi %6, %8 : vector<1x256xi1>
    %14 = arith.andi %6, %10 : vector<1x256xi1>
    %c0 = arith.constant 0 : index
    %c0_0 = arith.constant 0 : index
    %c0_1 = arith.constant 0 : index
    %15 = vector.load %arg1[%c0, %c0_0, %c0_1] : memref<1x4x256xf32, #tpu.memory_space<vmem>>, vector<1x4x256xf32>
    %16 = vector.shape_cast %15 : vector<1x4x256xf32> to vector<4x256xf32>
    %cst = arith.constant 0.000000e+00 : f32
    %17 = vector.broadcast %cst : f32 to vector<8x256xf32>
    %c17_i32 = arith.constant 17 : i32
    %18 = tpu.dynamic_rotate %16 by %c17_i32 dim 1 : vector<4x256xf32>, i32 -> vector<4x256xf32>
    %cst_2 = arith.constant 0.000000e+00 : f32
    %19 = vector.broadcast %cst_2 : f32 to vector<4x256xf32>
    %20 = vector.shape_cast %11 : vector<1x256xi1> to vector<1x256xi1>
    %21 = vector.broadcast %20 : vector<1x256xi1> to vector<4x256xi1>
    %22 = arith.select %21, %18, %19 : vector<4x256xi1>, vector<4x256xf32>
    %c0_3 = arith.constant 0 : index
    %c0_4 = arith.constant 0 : index
    %c0_5 = arith.constant 0 : index
    %23 = vector.load %arg2[%c0_3, %c0_4, %c0_5] : memref<9x8x4xf32, #tpu.memory_space<vmem>>, vector<1x8x4xf32>
    %24 = vector.shape_cast %23 : vector<1x8x4xf32> to vector<8x4xf32>
    %cst_6 = arith.constant dense<0.000000e+00> : vector<8x256xf32>
    %25 = tpu.matmul %24, %22, %cst_6 {dimension_numbers = #tpu.dot_dimension_numbers<[1], [0], [0], [1], [0, 0, 1, 1], [], []>} : vector<8x4xf32>, vector<4x256xf32>, vector<8x256xf32> -> vector<8x256xf32>
    %26 = arith.addf %17, %25 : vector<8x256xf32>
    %c16_i32_7 = arith.constant 16 : i32
    %27 = tpu.dynamic_rotate %16 by %c16_i32_7 dim 1 : vector<4x256xf32>, i32 -> vector<4x256xf32>
    %cst_8 = arith.constant 0.000000e+00 : f32
    %28 = vector.broadcast %cst_8 : f32 to vector<4x256xf32>
    %29 = vector.shape_cast %4 : vector<1x256xi1> to vector<1x256xi1>
    %30 = vector.broadcast %29 : vector<1x256xi1> to vector<4x256xi1>
    %31 = arith.select %30, %27, %28 : vector<4x256xi1>, vector<4x256xf32>
    %c1 = arith.constant 1 : index
    %c0_9 = arith.constant 0 : index
    %c0_10 = arith.constant 0 : index
    %32 = vector.load %arg2[%c1, %c0_9, %c0_10] : memref<9x8x4xf32, #tpu.memory_space<vmem>>, vector<1x8x4xf32>
    %33 = vector.shape_cast %32 : vector<1x8x4xf32> to vector<8x4xf32>
    %cst_11 = arith.constant dense<0.000000e+00> : vector<8x256xf32>
    %34 = tpu.matmul %33, %31, %cst_11 {dimension_numbers = #tpu.dot_dimension_numbers<[1], [0], [0], [1], [0, 0, 1, 1], [], []>} : vector<8x4xf32>, vector<4x256xf32>, vector<8x256xf32> -> vector<8x256xf32>
    %35 = arith.addf %26, %34 : vector<8x256xf32>
    %c15_i32 = arith.constant 15 : i32
    %36 = tpu.dynamic_rotate %16 by %c15_i32 dim 1 : vector<4x256xf32>, i32 -> vector<4x256xf32>
    %cst_12 = arith.constant 0.000000e+00 : f32
    %37 = vector.broadcast %cst_12 : f32 to vector<4x256xf32>
    %38 = vector.shape_cast %12 : vector<1x256xi1> to vector<1x256xi1>
    %39 = vector.broadcast %38 : vector<1x256xi1> to vector<4x256xi1>
    %40 = arith.select %39, %36, %37 : vector<4x256xi1>, vector<4x256xf32>
    %c2 = arith.constant 2 : index
    %c0_13 = arith.constant 0 : index
    %c0_14 = arith.constant 0 : index
    %41 = vector.load %arg2[%c2, %c0_13, %c0_14] : memref<9x8x4xf32, #tpu.memory_space<vmem>>, vector<1x8x4xf32>
    %42 = vector.shape_cast %41 : vector<1x8x4xf32> to vector<8x4xf32>
    %cst_15 = arith.constant dense<0.000000e+00> : vector<8x256xf32>
    %43 = tpu.matmul %42, %40, %cst_15 {dimension_numbers = #tpu.dot_dimension_numbers<[1], [0], [0], [1], [0, 0, 1, 1], [], []>} : vector<8x4xf32>, vector<4x256xf32>, vector<8x256xf32> -> vector<8x256xf32>
    %44 = arith.addf %35, %43 : vector<8x256xf32>
    %c1_i32_16 = arith.constant 1 : i32
    %45 = tpu.dynamic_rotate %16 by %c1_i32_16 dim 1 : vector<4x256xf32>, i32 -> vector<4x256xf32>
    %cst_17 = arith.constant 0.000000e+00 : f32
    %46 = vector.broadcast %cst_17 : f32 to vector<4x256xf32>
    %47 = vector.shape_cast %8 : vector<1x256xi1> to vector<1x256xi1>
    %48 = vector.broadcast %47 : vector<1x256xi1> to vector<4x256xi1>
    %49 = arith.select %48, %45, %46 : vector<4x256xi1>, vector<4x256xf32>
    %c3 = arith.constant 3 : index
    %c0_18 = arith.constant 0 : index
    %c0_19 = arith.constant 0 : index
    %50 = vector.load %arg2[%c3, %c0_18, %c0_19] : memref<9x8x4xf32, #tpu.memory_space<vmem>>, vector<1x8x4xf32>
    %51 = vector.shape_cast %50 : vector<1x8x4xf32> to vector<8x4xf32>
    %cst_20 = arith.constant dense<0.000000e+00> : vector<8x256xf32>
    %52 = tpu.matmul %51, %49, %cst_20 {dimension_numbers = #tpu.dot_dimension_numbers<[1], [0], [0], [1], [0, 0, 1, 1], [], []>} : vector<8x4xf32>, vector<4x256xf32>, vector<8x256xf32> -> vector<8x256xf32>
    %53 = arith.addf %44, %52 : vector<8x256xf32>
    %c4 = arith.constant 4 : index
    %c0_21 = arith.constant 0 : index
    %c0_22 = arith.constant 0 : index
    %54 = vector.load %arg2[%c4, %c0_21, %c0_22] : memref<9x8x4xf32, #tpu.memory_space<vmem>>, vector<1x8x4xf32>
    %55 = vector.shape_cast %54 : vector<1x8x4xf32> to vector<8x4xf32>
    %cst_23 = arith.constant dense<0.000000e+00> : vector<8x256xf32>
    %56 = tpu.matmul %55, %16, %cst_23 {dimension_numbers = #tpu.dot_dimension_numbers<[1], [0], [0], [1], [0, 0, 1, 1], [], []>} : vector<8x4xf32>, vector<4x256xf32>, vector<8x256xf32> -> vector<8x256xf32>
    %57 = arith.addf %53, %56 : vector<8x256xf32>
    %c255_i32 = arith.constant 255 : i32
    %58 = tpu.dynamic_rotate %16 by %c255_i32 dim 1 : vector<4x256xf32>, i32 -> vector<4x256xf32>
    %cst_24 = arith.constant 0.000000e+00 : f32
    %59 = vector.broadcast %cst_24 : f32 to vector<4x256xf32>
    %60 = vector.shape_cast %10 : vector<1x256xi1> to vector<1x256xi1>
    %61 = vector.broadcast %60 : vector<1x256xi1> to vector<4x256xi1>
    %62 = arith.select %61, %58, %59 : vector<4x256xi1>, vector<4x256xf32>
    %c5 = arith.constant 5 : index
    %c0_25 = arith.constant 0 : index
    %c0_26 = arith.constant 0 : index
    %63 = vector.load %arg2[%c5, %c0_25, %c0_26] : memref<9x8x4xf32, #tpu.memory_space<vmem>>, vector<1x8x4xf32>
    %64 = vector.shape_cast %63 : vector<1x8x4xf32> to vector<8x4xf32>
    %cst_27 = arith.constant dense<0.000000e+00> : vector<8x256xf32>
    %65 = tpu.matmul %64, %62, %cst_27 {dimension_numbers = #tpu.dot_dimension_numbers<[1], [0], [0], [1], [0, 0, 1, 1], [], []>} : vector<8x4xf32>, vector<4x256xf32>, vector<8x256xf32> -> vector<8x256xf32>
    %66 = arith.addf %57, %65 : vector<8x256xf32>
    %c241_i32 = arith.constant 241 : i32
    %67 = tpu.dynamic_rotate %16 by %c241_i32 dim 1 : vector<4x256xf32>, i32 -> vector<4x256xf32>
    %cst_28 = arith.constant 0.000000e+00 : f32
    %68 = vector.broadcast %cst_28 : f32 to vector<4x256xf32>
    %69 = vector.shape_cast %13 : vector<1x256xi1> to vector<1x256xi1>
    %70 = vector.broadcast %69 : vector<1x256xi1> to vector<4x256xi1>
    %71 = arith.select %70, %67, %68 : vector<4x256xi1>, vector<4x256xf32>
    %c6 = arith.constant 6 : index
    %c0_29 = arith.constant 0 : index
    %c0_30 = arith.constant 0 : index
    %72 = vector.load %arg2[%c6, %c0_29, %c0_30] : memref<9x8x4xf32, #tpu.memory_space<vmem>>, vector<1x8x4xf32>
    %73 = vector.shape_cast %72 : vector<1x8x4xf32> to vector<8x4xf32>
    %cst_31 = arith.constant dense<0.000000e+00> : vector<8x256xf32>
    %74 = tpu.matmul %73, %71, %cst_31 {dimension_numbers = #tpu.dot_dimension_numbers<[1], [0], [0], [1], [0, 0, 1, 1], [], []>} : vector<8x4xf32>, vector<4x256xf32>, vector<8x256xf32> -> vector<8x256xf32>
    %75 = arith.addf %66, %74 : vector<8x256xf32>
    %c240_i32_32 = arith.constant 240 : i32
    %76 = tpu.dynamic_rotate %16 by %c240_i32_32 dim 1 : vector<4x256xf32>, i32 -> vector<4x256xf32>
    %cst_33 = arith.constant 0.000000e+00 : f32
    %77 = vector.broadcast %cst_33 : f32 to vector<4x256xf32>
    %78 = vector.shape_cast %6 : vector<1x256xi1> to vector<1x256xi1>
    %79 = vector.broadcast %78 : vector<1x256xi1> to vector<4x256xi1>
    %80 = arith.select %79, %76, %77 : vector<4x256xi1>, vector<4x256xf32>
    %c7 = arith.constant 7 : index
    %c0_34 = arith.constant 0 : index
    %c0_35 = arith.constant 0 : index
    %81 = vector.load %arg2[%c7, %c0_34, %c0_35] : memref<9x8x4xf32, #tpu.memory_space<vmem>>, vector<1x8x4xf32>
    %82 = vector.shape_cast %81 : vector<1x8x4xf32> to vector<8x4xf32>
    %cst_36 = arith.constant dense<0.000000e+00> : vector<8x256xf32>
    %83 = tpu.matmul %82, %80, %cst_36 {dimension_numbers = #tpu.dot_dimension_numbers<[1], [0], [0], [1], [0, 0, 1, 1], [], []>} : vector<8x4xf32>, vector<4x256xf32>, vector<8x256xf32> -> vector<8x256xf32>
    %84 = arith.addf %75, %83 : vector<8x256xf32>
    %c239_i32 = arith.constant 239 : i32
    %85 = tpu.dynamic_rotate %16 by %c239_i32 dim 1 : vector<4x256xf32>, i32 -> vector<4x256xf32>
    %cst_37 = arith.constant 0.000000e+00 : f32
    %86 = vector.broadcast %cst_37 : f32 to vector<4x256xf32>
    %87 = vector.shape_cast %14 : vector<1x256xi1> to vector<1x256xi1>
    %88 = vector.broadcast %87 : vector<1x256xi1> to vector<4x256xi1>
    %89 = arith.select %88, %85, %86 : vector<4x256xi1>, vector<4x256xf32>
    %c8 = arith.constant 8 : index
    %c0_38 = arith.constant 0 : index
    %c0_39 = arith.constant 0 : index
    %90 = vector.load %arg2[%c8, %c0_38, %c0_39] : memref<9x8x4xf32, #tpu.memory_space<vmem>>, vector<1x8x4xf32>
    %91 = vector.shape_cast %90 : vector<1x8x4xf32> to vector<8x4xf32>
    %cst_40 = arith.constant dense<0.000000e+00> : vector<8x256xf32>
    %92 = tpu.matmul %91, %89, %cst_40 {dimension_numbers = #tpu.dot_dimension_numbers<[1], [0], [0], [1], [0, 0, 1, 1], [], []>} : vector<8x4xf32>, vector<4x256xf32>, vector<8x256xf32> -> vector<8x256xf32>
    %93 = arith.addf %84, %92 : vector<8x256xf32>
    %c0_41 = arith.constant 0 : index
    %c0_42 = arith.constant 0 : index
    %94 = vector.load %arg3[%c0_41, %c0_42] : memref<8x1xf32, #tpu.memory_space<vmem>>, vector<8x1xf32>
    %95 = vector.broadcast %94 : vector<8x1xf32> to vector<8x256xf32>
    %96 = arith.addf %93, %95 : vector<8x256xf32>
    %cst_43 = arith.constant 0.000000e+00 : f32
    %97 = vector.broadcast %cst_43 : f32 to vector<8x256xf32>
    %98 = arith.maximumf %96, %97 : vector<8x256xf32>
    %cst_44 = arith.constant 0.000000e+00 : f32
    %99 = vector.broadcast %cst_44 : f32 to vector<8x256xf32>
    %c17_i32_45 = arith.constant 17 : i32
    %100 = tpu.dynamic_rotate %98 by %c17_i32_45 dim 1 : vector<8x256xf32>, i32 -> vector<8x256xf32>
    %cst_46 = arith.constant 0.000000e+00 : f32
    %101 = vector.broadcast %cst_46 : f32 to vector<8x256xf32>
    %102 = vector.shape_cast %11 : vector<1x256xi1> to vector<1x256xi1>
    %103 = vector.broadcast %102 : vector<1x256xi1> to vector<8x256xi1>
    %104 = arith.select %103, %100, %101 : vector<8x256xi1>, vector<8x256xf32>
    %c0_47 = arith.constant 0 : index
    %c0_48 = arith.constant 0 : index
    %c0_49 = arith.constant 0 : index
    %105 = vector.load %arg4[%c0_47, %c0_48, %c0_49] : memref<9x8x8xf32, #tpu.memory_space<vmem>>, vector<1x8x8xf32>
    %106 = vector.shape_cast %105 : vector<1x8x8xf32> to vector<8x8xf32>
    %cst_50 = arith.constant dense<0.000000e+00> : vector<8x256xf32>
    %107 = tpu.matmul %106, %104, %cst_50 {dimension_numbers = #tpu.dot_dimension_numbers<[1], [0], [0], [1], [0, 0, 1, 1], [], []>} : vector<8x8xf32>, vector<8x256xf32>, vector<8x256xf32> -> vector<8x256xf32>
    %108 = arith.addf %99, %107 : vector<8x256xf32>
    %c16_i32_51 = arith.constant 16 : i32
    %109 = tpu.dynamic_rotate %98 by %c16_i32_51 dim 1 : vector<8x256xf32>, i32 -> vector<8x256xf32>
    %cst_52 = arith.constant 0.000000e+00 : f32
    %110 = vector.broadcast %cst_52 : f32 to vector<8x256xf32>
    %111 = vector.shape_cast %4 : vector<1x256xi1> to vector<1x256xi1>
    %112 = vector.broadcast %111 : vector<1x256xi1> to vector<8x256xi1>
    %113 = arith.select %112, %109, %110 : vector<8x256xi1>, vector<8x256xf32>
    %c1_53 = arith.constant 1 : index
    %c0_54 = arith.constant 0 : index
    %c0_55 = arith.constant 0 : index
    %114 = vector.load %arg4[%c1_53, %c0_54, %c0_55] : memref<9x8x8xf32, #tpu.memory_space<vmem>>, vector<1x8x8xf32>
    %115 = vector.shape_cast %114 : vector<1x8x8xf32> to vector<8x8xf32>
    %cst_56 = arith.constant dense<0.000000e+00> : vector<8x256xf32>
    %116 = tpu.matmul %115, %113, %cst_56 {dimension_numbers = #tpu.dot_dimension_numbers<[1], [0], [0], [1], [0, 0, 1, 1], [], []>} : vector<8x8xf32>, vector<8x256xf32>, vector<8x256xf32> -> vector<8x256xf32>
    %117 = arith.addf %108, %116 : vector<8x256xf32>
    %c15_i32_57 = arith.constant 15 : i32
    %118 = tpu.dynamic_rotate %98 by %c15_i32_57 dim 1 : vector<8x256xf32>, i32 -> vector<8x256xf32>
    %cst_58 = arith.constant 0.000000e+00 : f32
    %119 = vector.broadcast %cst_58 : f32 to vector<8x256xf32>
    %120 = vector.shape_cast %12 : vector<1x256xi1> to vector<1x256xi1>
    %121 = vector.broadcast %120 : vector<1x256xi1> to vector<8x256xi1>
    %122 = arith.select %121, %118, %119 : vector<8x256xi1>, vector<8x256xf32>
    %c2_59 = arith.constant 2 : index
    %c0_60 = arith.constant 0 : index
    %c0_61 = arith.constant 0 : index
    %123 = vector.load %arg4[%c2_59, %c0_60, %c0_61] : memref<9x8x8xf32, #tpu.memory_space<vmem>>, vector<1x8x8xf32>
    %124 = vector.shape_cast %123 : vector<1x8x8xf32> to vector<8x8xf32>
    %cst_62 = arith.constant dense<0.000000e+00> : vector<8x256xf32>
    %125 = tpu.matmul %124, %122, %cst_62 {dimension_numbers = #tpu.dot_dimension_numbers<[1], [0], [0], [1], [0, 0, 1, 1], [], []>} : vector<8x8xf32>, vector<8x256xf32>, vector<8x256xf32> -> vector<8x256xf32>
    %126 = arith.addf %117, %125 : vector<8x256xf32>
    %c1_i32_63 = arith.constant 1 : i32
    %127 = tpu.dynamic_rotate %98 by %c1_i32_63 dim 1 : vector<8x256xf32>, i32 -> vector<8x256xf32>
    %cst_64 = arith.constant 0.000000e+00 : f32
    %128 = vector.broadcast %cst_64 : f32 to vector<8x256xf32>
    %129 = vector.shape_cast %8 : vector<1x256xi1> to vector<1x256xi1>
    %130 = vector.broadcast %129 : vector<1x256xi1> to vector<8x256xi1>
    %131 = arith.select %130, %127, %128 : vector<8x256xi1>, vector<8x256xf32>
    %c3_65 = arith.constant 3 : index
    %c0_66 = arith.constant 0 : index
    %c0_67 = arith.constant 0 : index
    %132 = vector.load %arg4[%c3_65, %c0_66, %c0_67] : memref<9x8x8xf32, #tpu.memory_space<vmem>>, vector<1x8x8xf32>
    %133 = vector.shape_cast %132 : vector<1x8x8xf32> to vector<8x8xf32>
    %cst_68 = arith.constant dense<0.000000e+00> : vector<8x256xf32>
    %134 = tpu.matmul %133, %131, %cst_68 {dimension_numbers = #tpu.dot_dimension_numbers<[1], [0], [0], [1], [0, 0, 1, 1], [], []>} : vector<8x8xf32>, vector<8x256xf32>, vector<8x256xf32> -> vector<8x256xf32>
    %135 = arith.addf %126, %134 : vector<8x256xf32>
    %c4_69 = arith.constant 4 : index
    %c0_70 = arith.constant 0 : index
    %c0_71 = arith.constant 0 : index
    %136 = vector.load %arg4[%c4_69, %c0_70, %c0_71] : memref<9x8x8xf32, #tpu.memory_space<vmem>>, vector<1x8x8xf32>
    %137 = vector.shape_cast %136 : vector<1x8x8xf32> to vector<8x8xf32>
    %cst_72 = arith.constant dense<0.000000e+00> : vector<8x256xf32>
    %138 = tpu.matmul %137, %98, %cst_72 {dimension_numbers = #tpu.dot_dimension_numbers<[1], [0], [0], [1], [0, 0, 1, 1], [], []>} : vector<8x8xf32>, vector<8x256xf32>, vector<8x256xf32> -> vector<8x256xf32>
    %139 = arith.addf %135, %138 : vector<8x256xf32>
    %c255_i32_73 = arith.constant 255 : i32
    %140 = tpu.dynamic_rotate %98 by %c255_i32_73 dim 1 : vector<8x256xf32>, i32 -> vector<8x256xf32>
    %cst_74 = arith.constant 0.000000e+00 : f32
    %141 = vector.broadcast %cst_74 : f32 to vector<8x256xf32>
    %142 = vector.shape_cast %10 : vector<1x256xi1> to vector<1x256xi1>
    %143 = vector.broadcast %142 : vector<1x256xi1> to vector<8x256xi1>
    %144 = arith.select %143, %140, %141 : vector<8x256xi1>, vector<8x256xf32>
    %c5_75 = arith.constant 5 : index
    %c0_76 = arith.constant 0 : index
    %c0_77 = arith.constant 0 : index
    %145 = vector.load %arg4[%c5_75, %c0_76, %c0_77] : memref<9x8x8xf32, #tpu.memory_space<vmem>>, vector<1x8x8xf32>
    %146 = vector.shape_cast %145 : vector<1x8x8xf32> to vector<8x8xf32>
    %cst_78 = arith.constant dense<0.000000e+00> : vector<8x256xf32>
    %147 = tpu.matmul %146, %144, %cst_78 {dimension_numbers = #tpu.dot_dimension_numbers<[1], [0], [0], [1], [0, 0, 1, 1], [], []>} : vector<8x8xf32>, vector<8x256xf32>, vector<8x256xf32> -> vector<8x256xf32>
    %148 = arith.addf %139, %147 : vector<8x256xf32>
    %c241_i32_79 = arith.constant 241 : i32
    %149 = tpu.dynamic_rotate %98 by %c241_i32_79 dim 1 : vector<8x256xf32>, i32 -> vector<8x256xf32>
    %cst_80 = arith.constant 0.000000e+00 : f32
    %150 = vector.broadcast %cst_80 : f32 to vector<8x256xf32>
    %151 = vector.shape_cast %13 : vector<1x256xi1> to vector<1x256xi1>
    %152 = vector.broadcast %151 : vector<1x256xi1> to vector<8x256xi1>
    %153 = arith.select %152, %149, %150 : vector<8x256xi1>, vector<8x256xf32>
    %c6_81 = arith.constant 6 : index
    %c0_82 = arith.constant 0 : index
    %c0_83 = arith.constant 0 : index
    %154 = vector.load %arg4[%c6_81, %c0_82, %c0_83] : memref<9x8x8xf32, #tpu.memory_space<vmem>>, vector<1x8x8xf32>
    %155 = vector.shape_cast %154 : vector<1x8x8xf32> to vector<8x8xf32>
    %cst_84 = arith.constant dense<0.000000e+00> : vector<8x256xf32>
    %156 = tpu.matmul %155, %153, %cst_84 {dimension_numbers = #tpu.dot_dimension_numbers<[1], [0], [0], [1], [0, 0, 1, 1], [], []>} : vector<8x8xf32>, vector<8x256xf32>, vector<8x256xf32> -> vector<8x256xf32>
    %157 = arith.addf %148, %156 : vector<8x256xf32>
    %c240_i32_85 = arith.constant 240 : i32
    %158 = tpu.dynamic_rotate %98 by %c240_i32_85 dim 1 : vector<8x256xf32>, i32 -> vector<8x256xf32>
    %cst_86 = arith.constant 0.000000e+00 : f32
    %159 = vector.broadcast %cst_86 : f32 to vector<8x256xf32>
    %160 = vector.shape_cast %6 : vector<1x256xi1> to vector<1x256xi1>
    %161 = vector.broadcast %160 : vector<1x256xi1> to vector<8x256xi1>
    %162 = arith.select %161, %158, %159 : vector<8x256xi1>, vector<8x256xf32>
    %c7_87 = arith.constant 7 : index
    %c0_88 = arith.constant 0 : index
    %c0_89 = arith.constant 0 : index
    %163 = vector.load %arg4[%c7_87, %c0_88, %c0_89] : memref<9x8x8xf32, #tpu.memory_space<vmem>>, vector<1x8x8xf32>
    %164 = vector.shape_cast %163 : vector<1x8x8xf32> to vector<8x8xf32>
    %cst_90 = arith.constant dense<0.000000e+00> : vector<8x256xf32>
    %165 = tpu.matmul %164, %162, %cst_90 {dimension_numbers = #tpu.dot_dimension_numbers<[1], [0], [0], [1], [0, 0, 1, 1], [], []>} : vector<8x8xf32>, vector<8x256xf32>, vector<8x256xf32> -> vector<8x256xf32>
    %166 = arith.addf %157, %165 : vector<8x256xf32>
    %c239_i32_91 = arith.constant 239 : i32
    %167 = tpu.dynamic_rotate %98 by %c239_i32_91 dim 1 : vector<8x256xf32>, i32 -> vector<8x256xf32>
    %cst_92 = arith.constant 0.000000e+00 : f32
    %168 = vector.broadcast %cst_92 : f32 to vector<8x256xf32>
    %169 = vector.shape_cast %14 : vector<1x256xi1> to vector<1x256xi1>
    %170 = vector.broadcast %169 : vector<1x256xi1> to vector<8x256xi1>
    %171 = arith.select %170, %167, %168 : vector<8x256xi1>, vector<8x256xf32>
    %c8_93 = arith.constant 8 : index
    %c0_94 = arith.constant 0 : index
    %c0_95 = arith.constant 0 : index
    %172 = vector.load %arg4[%c8_93, %c0_94, %c0_95] : memref<9x8x8xf32, #tpu.memory_space<vmem>>, vector<1x8x8xf32>
    %173 = vector.shape_cast %172 : vector<1x8x8xf32> to vector<8x8xf32>
    %cst_96 = arith.constant dense<0.000000e+00> : vector<8x256xf32>
    %174 = tpu.matmul %173, %171, %cst_96 {dimension_numbers = #tpu.dot_dimension_numbers<[1], [0], [0], [1], [0, 0, 1, 1], [], []>} : vector<8x8xf32>, vector<8x256xf32>, vector<8x256xf32> -> vector<8x256xf32>
    %175 = arith.addf %166, %174 : vector<8x256xf32>
    %c0_97 = arith.constant 0 : index
    %c0_98 = arith.constant 0 : index
    %176 = vector.load %arg5[%c0_97, %c0_98] : memref<8x1xf32, #tpu.memory_space<vmem>>, vector<8x1xf32>
    %177 = vector.broadcast %176 : vector<8x1xf32> to vector<8x256xf32>
    %178 = arith.addf %175, %177 : vector<8x256xf32>
    %cst_99 = arith.constant 0.000000e+00 : f32
    %179 = vector.broadcast %cst_99 : f32 to vector<8x256xf32>
    %180 = arith.maximumf %178, %179 : vector<8x256xf32>
    %c0_100 = arith.constant 0 : index
    %c0_101 = arith.constant 0 : index
    %c0_102 = arith.constant 0 : index
    %181 = vector.load %arg6[%c0_100, %c0_101, %c0_102] : memref<1x8x256xf32, #tpu.memory_space<vmem>>, vector<1x8x256xf32>
    %182 = vector.shape_cast %181 : vector<1x8x256xf32> to vector<8x256xf32>
    %183 = vector.shape_cast %180 : vector<8x256xf32> to vector<1x8x256xf32>
    tpu.vector_store %arg6[%c0_100, %c0_101, %c0_102], %183 {strides = array<i32>} : memref<1x8x256xf32, #tpu.memory_space<vmem>>, vector<1x8x256xf32>,
    return
  }
  func.func @transform_0(%arg0: i32) -> (i32, i32, i32) {
    %c0_i32 = arith.constant 0 : i32
    %c0_i32_0 = arith.constant 0 : i32
    %c0_i32_1 = arith.constant 0 : i32
    return %arg0, %c0_i32, %c0_i32_0 : i32, i32, i32
  }
  func.func @transform_1(%arg0: i32) -> (i32, i32, i32) {
    %c0_i32 = arith.constant 0 : i32
    %c0_i32_0 = arith.constant 0 : i32
    %c0_i32_1 = arith.constant 0 : i32
    %c0_i32_2 = arith.constant 0 : i32
    return %c0_i32, %c0_i32_0, %c0_i32_1 : i32, i32, i32
  }
  func.func @transform_2(%arg0: i32) -> (i32, i32) {
    %c0_i32 = arith.constant 0 : i32
    %c0_i32_0 = arith.constant 0 : i32
    %c0_i32_1 = arith.constant 0 : i32
    return %c0_i32, %c0_i32_0 : i32, i32
  }
  func.func @transform_3(%arg0: i32) -> (i32, i32, i32) {
    %c0_i32 = arith.constant 0 : i32
    %c0_i32_0 = arith.constant 0 : i32
    %c0_i32_1 = arith.constant 0 : i32
    %c0_i32_2 = arith.constant 0 : i32
    return %c0_i32, %c0_i32_0, %c0_i32_1 : i32, i32, i32
  }
  func.func @transform_4(%arg0: i32) -> (i32, i32) {
    %c0_i32 = arith.constant 0 : i32
    %c0_i32_0 = arith.constant 0 : i32
    %c0_i32_1 = arith.constant 0 : i32
    return %c0_i32, %c0_i32_0 : i32, i32
  }
  func.func @transform_5(%arg0: i32) -> (i32, i32, i32) {
    %c0_i32 = arith.constant 0 : i32
    %c0_i32_0 = arith.constant 0 : i32
    %c0_i32_1 = arith.constant 0 : i32
    return %arg0, %c0_i32, %c0_i32_0 : i32, i32, i32
  }
}

</mosaic_0001>

<llo_original>
// kernel: tpu_custom_call.1
$region0: #{tpu_custom_call.1}
  #allocation0 [shape = 'u32[]', space=smem, size = 0x4, offset = 0x4, fixed_abs, tag = 'smem constant byte address 0x4 - core index']
  #allocation1 [shape = 'u32[144,128]{1,0:T(1,128)}', space=vmem, size = 0x12000, scoped, tag = 'internal scratch']
  %s0 = inlined_call_operand.vmem [shape: f32[2,4,256], index: 0, kind: input, shape index: {}]
  %s1 = inlined_call_operand.vmem [shape: f32[9,8,4], index: 1, kind: input, shape index: {}]
  %s2 = inlined_call_operand.vmem [shape: f32[8,1], index: 2, kind: input, shape index: {}]
  %s3 = inlined_call_operand.vmem [shape: f32[9,8,8], index: 3, kind: input, shape index: {}]
  %s4 = inlined_call_operand.vmem [shape: f32[8,1], index: 4, kind: input, shape index: {}]
  %s5 = inlined_call_operand.hbm [shape: f32[2,8,256], index: 5, kind: output, shape index: {}]
  %s6 = sld [smem:[#allocation0]]
  $region53: #{tpu_custom_call.1} parent=0
    _
  %s8 = ssub.s32 1, %s6
  %s9 = scalar_select 0, %s8, %s6
  $region1: #{tpu_custom_call.1} parent=0
    #allocation2 [shape = 'u8[16384]{0}', space=vmem, size = 0x4000, scoped, tag = 'output window, operand 0']
    #allocation3 [shape = 's32[2]{0}', space=sflag, size = 0x8, scoped, tag = 'scoped memory for tpu_custom_call.1']
    %10 = vsyncpa [#allocation3], 0
    %s11 = scalar_lea.sflag [#allocation3], 1
    %12 = vsyncpa %s11, 0
    loop: start=0, step=1, limit=4
    $region2: #{tpu_custom_call.1} parent=1 // loop_pre_header
      _
    $region3: #{tpu_custom_call.1} parent=1 // loop_header
      %s14 = sphi 0, %s18
      %p15 = scmp.ge.s32.totalorder %s14, 4
      %s24 = sphi 0, %s26
      %s27 = sphi 0, %s24
      %s28 = sphi 0, %s27
      %s44 = sphi 0, %s28
      %s48 = sphi 0, %s48
      %s50 = sphi 0, %s48
      %s51 = sphi 0, %s50
      %s65 = sphi 0, %s51
      %s69 = sphi 0, %s69
      %s71 = sphi 0, %s69
      %s72 = sphi 0, %s71
      %s86 = sphi 0, %s72
      %s90 = sphi 0, %s90
      %s92 = sphi 0, %s90
      %s93 = sphi 0, %s92
      %s107 = sphi 0, %s93
      %s111 = sphi 0, %s111
      %s113 = sphi 0, %s111
      %s114 = sphi 0, %s113
      %s128 = sphi 0, %s114
      %s134 = sphi 0, %s136
      %s137 = sphi 0, %s134
      %s138 = sphi 0, %s137
      %s154 = sphi 0, %s138
    $region4: #{tpu_custom_call.1} parent=1 // loop_header_branch
      %17 = sbr.rel (%p15) target = $region8
    $region5: #{tpu_custom_call.1} parent=1 // loop_body
      %s19 = ssub.s32 %s14, 1
      %s20 = ssub.s32 %s14, 2
      %s21 = sadd.s32 %s14, 1
      %s22 = ssub.s32 %s14, %s21
      %p23 = scmp.eq.s32.totalorder %s22, 0
      %s25 = sadd.s32 %s24, 1
      %s26 = scalar_select %p23, %s24, %s25
      %p29 = pneg %p23
      %p30 = scmp.eq.s32.totalorder %s14, 1
      %p31 = por %p29, %p30
      %p32 = scmp.ne.s32.totalorder %s24, %s27
      %p33 = scmp.eq.s32.totalorder %s14, 0
      %p34 = por %p32, %p33
      %p35 = scmp.ne.s32.totalorder %s24, %s27
      %p36 = scmp.eq.s32.totalorder %s19, 1
      %p37 = por %p35, %p36
      %p38 = scmp.ne.s32.totalorder %s27, %s28
      %p39 = scmp.eq.s32.totalorder %s19, 0
      %p40 = por %p38, %p39
      %p41 = scmp.ne.s32.totalorder %s27, %s28
      %p42 = scmp.eq.s32.totalorder %s20, 1
      %p43 = por %p41, %p42
      %p45 = scmp.ne.s32.totalorder %s28, %s44
      %p46 = scmp.eq.s32.totalorder %s20, 0
      %p47 = por %p45, %p46
      %s49 = sadd.s32 %s48, 1
      %p52 = scmp.eq.s32.totalorder %s14, 1
      %p53 = scmp.ne.s32.totalorder %s48, %s50
      %p54 = scmp.eq.s32.totalorder %s14, 0
      %p55 = por %p53, %p54
      %p56 = scmp.ne.s32.totalorder %s48, %s50
      %p57 = scmp.eq.s32.totalorder %s19, 1
      %p58 = por %p56, %p57
      %p59 = scmp.ne.s32.totalorder %s50, %s51
      %p60 = scmp.eq.s32.totalorder %s19, 0
      %p61 = por %p59, %p60
      %p62 = scmp.ne.s32.totalorder %s50, %s51
      %p63 = scmp.eq.s32.totalorder %s20, 1
      %p64 = por %p62, %p63
      %p66 = scmp.ne.s32.totalorder %s51, %s65
      %p67 = scmp.eq.s32.totalorder %s20, 0
      %p68 = por %p66, %p67
      %s70 = sadd.s32 %s69, 1
      %p73 = scmp.eq.s32.totalorder %s14, 1
      %p74 = scmp.ne.s32.totalorder %s69, %s71
      %p75 = scmp.eq.s32.totalorder %s14, 0
      %p76 = por %p74, %p75
      %p77 = scmp.ne.s32.totalorder %s69, %s71
      %p78 = scmp.eq.s32.totalorder %s19, 1
      %p79 = por %p77, %p78
      %p80 = scmp.ne.s32.totalorder %s71, %s72
      %p81 = scmp.eq.s32.totalorder %s19, 0
      %p82 = por %p80, %p81
      %p83 = scmp.ne.s32.totalorder %s71, %s72
      %p84 = scmp.eq.s32.totalorder %s20, 1
      %p85 = por %p83, %p84
      %p87 = scmp.ne.s32.totalorder %s72, %s86
      %p88 = scmp.eq.s32.totalorder %s20, 0
      %p89 = por %p87, %p88
      %s91 = sadd.s32 %s90, 1
      %p94 = scmp.eq.s32.totalorder %s14, 1
      %p95 = scmp.ne.s32.totalorder %s90, %s92
      %p96 = scmp.eq.s32.totalorder %s14, 0
      %p97 = por %p95, %p96
      %p98 = scmp.ne.s32.totalorder %s90, %s92
      %p99 = scmp.eq.s32.totalorder %s19, 1
      %p100 = por %p98, %p99
      %p101 = scmp.ne.s32.totalorder %s92, %s93
      %p102 = scmp.eq.s32.totalorder %s19, 0
      %p103 = por %p101, %p102
      %p104 = scmp.ne.s32.totalorder %s92, %s93
      %p105 = scmp.eq.s32.totalorder %s20, 1
      %p106 = por %p104, %p105
      %p108 = scmp.ne.s32.totalorder %s93, %s107
      %p109 = scmp.eq.s32.totalorder %s20, 0
      %p110 = por %p108, %p109
      %s112 = sadd.s32 %s111, 1
      %p115 = scmp.eq.s32.totalorder %s14, 1
      %p116 = scmp.ne.s32.totalorder %s111, %s113
      %p117 = scmp.eq.s32.totalorder %s14, 0
      %p118 = por %p116, %p117
      %p119 = scmp.ne.s32.totalorder %s111, %s113
      %p120 = scmp.eq.s32.totalorder %s19, 1
      %p121 = por %p119, %p120
      %p122 = scmp.ne.s32.totalorder %s113, %s114
      %p123 = scmp.eq.s32.totalorder %s19, 0
      %p124 = por %p122, %p123
      %p125 = scmp.ne.s32.totalorder %s113, %s114
      %p126 = scmp.eq.s32.totalorder %s20, 1
      %p127 = por %p125, %p126
      %p129 = scmp.ne.s32.totalorder %s114, %s128
      %p130 = scmp.eq.s32.totalorder %s20, 0
      %p131 = por %p129, %p130
      %s132 = ssub.s32 %s14, %s21
      %p133 = scmp.eq.s32.totalorder %s132, 0
      %s135 = sadd.s32 %s134, 1
      %s136 = scalar_select %p133, %s134, %s135
      %p139 = pneg %p133
      %p140 = scmp.eq.s32.totalorder %s14, 1
      %p141 = por %p139, %p140
      %p142 = scmp.ne.s32.totalorder %s134, %s137
      %p143 = scmp.eq.s32.totalorder %s14, 0
      %p144 = por %p142, %p143
      %p145 = scmp.ne.s32.totalorder %s134, %s137
      %p146 = scmp.eq.s32.totalorder %s19, 1
      %p147 = por %p145, %p146
      %p148 = scmp.ne.s32.totalorder %s137, %s138
      %p149 = scmp.eq.s32.totalorder %s19, 0
      %p150 = por %p148, %p149
      %p151 = scmp.ne.s32.totalorder %s137, %s138
      %p152 = scmp.eq.s32.totalorder %s20, 1
      %p153 = por %p151, %p152
      %p155 = scmp.ne.s32.totalorder %s138, %s154
      %p156 = scmp.eq.s32.totalorder %s20, 0
      %p157 = por %p155, %p156
      %p158 = scmp.le.s32.totalorder 1, %s14
      %p159 = scmp.lt.s32.totalorder %s14, 3
      %p160 = pnand %p158, %p159
      %p161 = pneg %p160
      // Predicated region
      $region9: #{tpu_custom_call.1} parent=5 // pred_check
        _
      $region10: #{tpu_custom_call.1} parent=5 // pred_check_branch
        %163 = sbr.rel (%p160) target = $region12
      $region11: #{tpu_custom_call.1} parent=5 // pred_region
        %s164 = ssub.s32 %s14, 1
        // Predicated region
        $region13: #{tpu_custom_call.1} parent=11 // pred_check
          %p165 = pneg %p61
        $region14: #{tpu_custom_call.1} parent=11 // pred_check_branch
          %167 = sbr.rel (%p165) target = $region16
        $region15: #{tpu_custom_call.1} parent=11 // pred_region
          _
        $region16: #{tpu_custom_call.1} parent=11 // pred_fallthru
          _
        // Predicated region
        $region17: #{tpu_custom_call.1} parent=11 // pred_check
          %p168 = pneg %p82
        $region18: #{tpu_custom_call.1} parent=11 // pred_check_branch
          %170 = sbr.rel (%p168) target = $region20
        $region19: #{tpu_custom_call.1} parent=11 // pred_region
          _
        $region20: #{tpu_custom_call.1} parent=11 // pred_fallthru
          _
        // Predicated region
        $region21: #{tpu_custom_call.1} parent=11 // pred_check
          %p171 = pneg %p103
        $region22: #{tpu_custom_call.1} parent=11 // pred_check_branch
          %173 = sbr.rel (%p171) target = $region24
        $region23: #{tpu_custom_call.1} parent=11 // pred_region
          _
        $region24: #{tpu_custom_call.1} parent=11 // pred_fallthru
          _
        // Predicated region
        $region25: #{tpu_custom_call.1} parent=11 // pred_check
          %p174 = pneg %p124
        $region26: #{tpu_custom_call.1} parent=11 // pred_check_branch
          %176 = sbr.rel (%p174) target = $region28
        $region27: #{tpu_custom_call.1} parent=11 // pred_region
          _
        $region28: #{tpu_custom_call.1} parent=11 // pred_fallthru
          _
      $region12: #{tpu_custom_call.1} parent=5 // pred_fallthru
        _
      %p177 = scmp.lt.s32.totalorder %s14, 2
      // Predicated region
      $region29: #{tpu_custom_call.1} parent=5 // pred_check
        %p178 = pneg %p177
      $region30: #{tpu_custom_call.1} parent=5 // pred_check_branch
        %180 = sbr.rel (%p178) target = $region32
      $region31: #{tpu_custom_call.1} parent=5 // pred_region
        // Predicated region
        $region33: #{tpu_custom_call.1} parent=31 // pred_check
          %p181 = pneg %p34
        $region34: #{tpu_custom_call.1} parent=31 // pred_check_branch
          %183 = sbr.rel (%p181) target = $region36
        $region35: #{tpu_custom_call.1} parent=31 // pred_region
          %p184 = scmp.lt.s32.totalorder %s14, 1
          %s185 = scalar_select %p184, %s14, 1
          %s186 = smul.addr %s185, 2
          %s187 = smul.addr %s186, 4
          %s188 = scalar_lea.vmem %s0, %s187
        $region36: #{tpu_custom_call.1} parent=31 // pred_fallthru
          _
      $region32: #{tpu_custom_call.1} parent=5 // pred_fallthru
        _
      %p189 = scmp.le.s32.totalorder 1, %s14
      %p190 = scmp.lt.s32.totalorder %s14, 3
      %p191 = pnand %p189, %p190
      %p192 = pneg %p191
      // Predicated region
      $region37: #{tpu_custom_call.1} parent=5 // pred_check
        _
      $region38: #{tpu_custom_call.1} parent=5 // pred_check_branch
        %194 = sbr.rel (%p191) target = $region40
      $region39: #{tpu_custom_call.1} parent=5 // pred_region
        %s195 = ssub.s32 %s14, 1
        %p196 = scmp.lt.s32.totalorder %s19, 1
        %s197 = scalar_select %p196, %s19, 1
        %s198 = smul.addr %s197, 2
        %s199 = smul.addr %s198, 4
        %s200 = scalar_lea.vmem %s0, %s199
        %p201 = pneg %p40
        %p202 = pneg %p37
        %p203 = pneg %p61
        %p204 = pneg %p58
        %p205 = pneg %p82
        %p206 = pneg %p79
        %p207 = pneg %p103
        %p208 = pneg %p100
        %p209 = pneg %p124
        %p210 = pneg %p121
        %p211 = pneg %p150
        %p212 = pneg %p147
        %s213 = sand.u32 %s137, 1
        %s214 = scalar_lea.sflag [#allocation3], %s213
        %s215 = sand.u32 %s137, 1
        %s216 = smul.addr %s215, 16
        %s217 = scalar_lea.vmem [#allocation2], %s216
        %p218 = scmp.lt.s32.totalorder %s19, 1
        %s219 = scalar_select %p218, %s19, 1
        %s220 = smul.addr %s219, 2
        %s221 = smul.addr %s220, 4
        %s222 = scalar_lea.vmem %s0, %s221
        %v223 = vlaneseq
        %v224 = vand.u32 %v223, 127
        %v225 = vadd.s32 %v224, 128
        %v226 = vcombine.high %v224, 0
        %v228 = vunpack.c.l.s4 1983009808
        %v229 = vunpack.c.0.s8 %v228
        %v230 = vlaneseq
        %v231 = vshrl.u32 %v230, 7
        %v232 = vsub.s32 %v229, %v231
        %v233 = vrot.slane %v224, %v232
        %v235 = vunpack.c.l.s4 1983009808
        %v236 = vunpack.c.0.s8 %v235
        %v237 = vlaneseq
        %v238 = vshrl.u32 %v237, 7
        %v239 = vsub.s32 %v236, %v238
        %v240 = vrot.slane %v226, %v239
        %v241 = vcombine.high %v233, 0
        %v243 = vunpack.c.l.s4 1934713408
        %v244 = vunpack.c.0.s8 %v243
        %v245 = vlaneseq
        %v246 = vshrl.u32 %v245, 7
        %v247 = vsub.s32 %v244, %v246
        %v248 = vrot.slane %v233, %v247
        %v250 = vunpack.c.l.s4 1934713408
        %v251 = vunpack.c.0.s8 %v250
        %v252 = vlaneseq
        %v253 = vshrl.u32 %v252, 7
        %v254 = vsub.s32 %v251, %v253
        %v255 = vrot.slane %v241, %v254
        %v256 = vcombine.high %v240, 0
        %v258 = vunpack.c.l.s4 1934713408
        %v259 = vunpack.c.0.s8 %v258
        %v260 = vlaneseq
        %v261 = vshrl.u32 %v260, 7
        %v262 = vsub.s32 %v259, %v261
        %v263 = vrot.slane %v240, %v262
        %v265 = vunpack.c.l.s4 1934713408
        %v266 = vunpack.c.0.s8 %v265
        %v267 = vlaneseq
        %v268 = vshrl.u32 %v267, 7
        %v269 = vsub.s32 %v266, %v268
        %v270 = vrot.slane %v256, %v269
        %v271 = vcombine.high %v248, 0
        %v272 = vcombine.high %v255, 0
        %v273 = vcombine.high %v263, 0
        %v274 = vcombine.high %v270, 0
        %275 = vrot.lane.b32.xlu0 %v271, 16
        %v276 = vpop.permute.xlu0 %275
        %277 = vrot.lane.b32.xlu0 %v255, 32
        %v278 = vpop.permute.xlu0 %277
        %279 = vrot.lane.b32.xlu0 %v272, 48
        %v280 = vpop.permute.xlu0 %279
        %281 = vrot.lane.b32.xlu0 %v263, 64
        %v282 = vpop.permute.xlu0 %281
        %283 = vrot.lane.b32.xlu0 %v273, 80
        %v284 = vpop.permute.xlu0 %283
        %285 = vrot.lane.b32.xlu0 %v270, 96
        %v286 = vpop.permute.xlu0 %285
        %287 = vrot.lane.b32.xlu0 %v274, 112
        %v288 = vpop.permute.xlu0 %287
        %vm289 = vcmask 130048
        %v290 = vsel %vm289, %v248, %v276
        %vm291 = vcmask 261120
        %v292 = vsel %vm291, %v290, %v278
        %vm293 = vcmask 392192
        %v294 = vsel %vm293, %v292, %v280
        %vm295 = vcmask 523264
        %v296 = vsel %vm295, %v294, %v282
        %vm297 = vcmask 654336
        %v298 = vsel %vm297, %v296, %v284
        %vm299 = vcmask 785408
        %v300 = vsel %vm299, %v298, %v286
        %vm301 = vcmask 916480
        %v302 = vsel %vm301, %v300, %v288
        %vm303 = vcmp.ge.s32.totalorder %v224, 16
        %vm304 = vcmp.ge.s32.totalorder %v225, 16
        %vm305 = vcmp.lt.s32.totalorder %v224, 240
        %vm306 = vcmp.lt.s32.totalorder %v225, 240
        %vm307 = vcmp.ge.s32.totalorder %v302, 1
        %vm308 = vcmp.le.s32.totalorder %v302, 14
        %vm309 = vmand %vm303, %vm307
        %vm310 = vmand %vm304, %vm307
        %vm311 = vmand %vm303, %vm308
        %vm312 = vmand %vm304, %vm308
        %vm313 = vmand %vm305, %vm307
        %vm314 = vmand %vm306, %vm307
        %vm315 = vmand %vm305, %vm308
        %vm316 = vmand %vm306, %vm308
        %v317 = vld [vmem:[%s222] sm:$0xff]
        %v319 = vcombine.high %v317, %v317
        %321 = vrot.lane.b32.xlu0 %v317, 17
        %v322 = vpop.permute.xlu0 %321
        %323 = vrot.lane.b32.xlu0 %v319, 17
        %v324 = vpop.permute.xlu0 %323
        %vm325 = vcmp.lt.s32.totalorder %v224, 17
        %v326 = vsel %vm325, %v322, %v324
        %v327 = vsel %vm325, %v324, %v322
        %v328 = vsel %vm309, 1, 0
        %v329 = vsel %vm310, 1, 0
        %v330 = vlaneseq
        %v331 = vshrl.u32 %v330, 7
        %v332 = vsub.s32 0, %v331
        %v333 = vrot.slane %v328, %v332
        %v334 = vlaneseq
        %v335 = vshrl.u32 %v334, 7
        %v336 = vsub.s32 0, %v335
        %v337 = vrot.slane %v329, %v336
        %vm338 = vcmp.eq.s32.totalorder %v333, 1
        %vm339 = vcmp.eq.s32.totalorder %v337, 1
        %v340 = vsel %vm338, %v327, 0.0
        %v341 = vsel %vm339, %v326, 0.0
        %v342 = vld [vmem:[%s1] sm:$0xff]
        %343 = vrot.lane.b32.xlu0 %v317, 16
        %v344 = vpop.permute.xlu0 %343
        %345 = vrot.lane.b32.xlu0 %v319, 16
        %v346 = vpop.permute.xlu0 %345
        %vm347 = vcmp.lt.s32.totalorder %v224, 16
        %v348 = vsel %vm347, %v344, %v346
        %v349 = vsel %vm347, %v346, %v344
        %v350 = vsel %vm303, 1, 0
        %v351 = vsel %vm304, 1, 0
        %vm352 = vcmp.eq.s32.totalorder %v350, 1
        %vm353 = vcmp.eq.s32.totalorder %v351, 1
        %v354 = vsel %vm352, %v349, 0.0
        %v355 = vsel %vm353, %v348, 0.0
        %s356 = scalar_lea.vmem %s1, 8
        %v357 = vld [vmem:[%s356] sm:$0xff]
        %vm358 = vcmask 31744
        %v360 = vsel %vm358, %v357, 0
        %vm362 = vcmask 1043456
        %v364 = vsel %vm362, %v354, 0
        %v367 = vsel %vm362, %v355, 0
        %369 = vmatprep.subr.mxu0 %v367
        %370 = vmatpush1.msra.mxu0 %v364
        %371 = vmatprep.subr.mxu0 0.0
        %372 = vmatpush1.msra.mxu0 0.0
        %373 = vmatprep.subr.mxu0 0.0
        %374 = vmatpush1.msra.mxu0 0.0
        %375 = vmatprep.subr.mxu0 0.0
        %376 = vmatpush1.msra.mxu0 0.0
        %377 = vmatprep.subr.mxu0 0.0
        %378 = vmatpush1.msra.mxu0 0.0
        %379 = vmatprep.subr.mxu0 0.0
        %380 = vmatpush1.msra.mxu0 0.0
        %381 = vmatprep.subr.mxu0 0.0
        %382 = vmatpush1.msra.mxu0 0.0
        %383 = vmatprep.subr.mxu0 0.0
        %384 = vmatpush1.msra.mxu0 0.0
        %385 = vmatprep.subr.mxu0 0.0
        %386 = vmatpush1.msra.mxu0 0.0
        %387 = vmatprep.subr.mxu0 0.0
        %388 = vmatpush1.msra.mxu0 0.0
        %389 = vmatprep.subr.mxu0 0.0
        %390 = vmatpush1.msra.mxu0 0.0
        %391 = vmatprep.subr.mxu0 0.0
        %392 = vmatpush1.msra.mxu0 0.0
        %393 = vmatprep.subr.mxu0 0.0
        %394 = vmatpush1.msra.mxu0 0.0
        %395 = vmatprep.subr.mxu0 0.0
        %396 = vmatpush1.msra.mxu0 0.0
        %397 = vmatprep.subr.mxu0 0.0
        %398 = vmatpush1.msra.mxu0 0.0
        %399 = vmatprep.subr.mxu0 0.0
        %400 = vmatpush1.msra.mxu0 0.0
        %401 = vmatprep.subr.mxu0 0.0
        %402 = vmatpush1.msra.mxu0 0.0
        %403 = vmatprep.subr.mxu0 0.0
        %404 = vmatpush1.msra.mxu0 0.0
        %405 = vmatprep.subr.mxu0 0.0
        %406 = vmatpush1.msra.mxu0 0.0
        %407 = vmatprep.subr.mxu0 0.0
        %408 = vmatpush1.msra.mxu0 0.0
        %409 = vmatprep.subr.mxu0 0.0
        %410 = vmatpush1.msra.mxu0 0.0
        %411 = vmatprep.subr.mxu0 0.0
        %412 = vmatpush1.msra.mxu0 0.0
        %413 = vmatprep.subr.mxu0 0.0
        %414 = vmatpush1.msra.mxu0 0.0
        %415 = vmatprep.subr.mxu0 0.0
        %416 = vmatpush1.msra.mxu0 0.0
        %417 = vmatprep.subr.mxu0 0.0
        %418 = vmatpush1.msra.mxu0 0.0
        %419 = vmatprep.subr.mxu0 0.0
        %420 = vmatpush1.msra.mxu0 0.0
        %421 = vmatprep.subr.mxu0 0.0
        %422 = vmatpush1.msra.mxu0 0.0
        %423 = vmatprep.subr.mxu0 0.0
        %424 = vmatpush1.msra.mxu0 0.0
        %425 = vmatprep.subr.mxu0 0.0
        %426 = vmatpush1.msra.mxu0 0.0
        %427 = vmatprep.subr.mxu0 0.0
        %428 = vmatpush1.msra.mxu0 0.0
        %429 = vmatprep.subr.mxu0 0.0
        %430 = vmatpush1.msra.mxu0 0.0
        %431 = vmatprep.subr.mxu0 0.0
        %432 = vmatpush1.msra.mxu0 0.0
        %433 = vmatprep.mubr.f32.mxu0 0.0
        %434 = vmatmul.mubr.f32.gmra.mrb[0].mxu0 %v360
        %v435 = vpop.f32.mrb[0].mxu0
        %v436 = vadd.f32 0.0, %v435
        %v437 = vpop.f32.mrb[0].mxu0
        %v438 = vadd.f32 0.0, %v437
        %439 = vdwg.mxu0
        %v441 = vsel %vm358, %v342, 0
        %v444 = vsel %vm362, %v340, 0
        %v447 = vsel %vm362, %v341, 0
        %449 = vmatprep.subr.mxu0 %v447
        %450 = vmatpush1.msra.mxu0 %v444
        %451 = vmatprep.subr.mxu0 0.0
        %452 = vmatpush1.msra.mxu0 0.0
        %453 = vmatprep.subr.mxu0 0.0
        %454 = vmatpush1.msra.mxu0 0.0
        %455 = vmatprep.subr.mxu0 0.0
        %456 = vmatpush1.msra.mxu0 0.0
        %457 = vmatprep.subr.mxu0 0.0
        %458 = vmatpush1.msra.mxu0 0.0
        %459 = vmatprep.subr.mxu0 0.0
        %460 = vmatpush1.msra.mxu0 0.0
        %461 = vmatprep.subr.mxu0 0.0
        %462 = vmatpush1.msra.mxu0 0.0
        %463 = vmatprep.subr.mxu0 0.0
        %464 = vmatpush1.msra.mxu0 0.0
        %465 = vmatprep.subr.mxu0 0.0
        %466 = vmatpush1.msra.mxu0 0.0
        %467 = vmatprep.subr.mxu0 0.0
        %468 = vmatpush1.msra.mxu0 0.0
        %469 = vmatprep.subr.mxu0 0.0
        %470 = vmatpush1.msra.mxu0 0.0
        %471 = vmatprep.subr.mxu0 0.0
        %472 = vmatpush1.msra.mxu0 0.0
        %473 = vmatprep.subr.mxu0 0.0
        %474 = vmatpush1.msra.mxu0 0.0
        %475 = vmatprep.subr.mxu0 0.0
        %476 = vmatpush1.msra.mxu0 0.0
        %477 = vmatprep.subr.mxu0 0.0
        %478 = vmatpush1.msra.mxu0 0.0
        %479 = vmatprep.subr.mxu0 0.0
        %480 = vmatpush1.msra.mxu0 0.0
        %481 = vmatprep.subr.mxu0 0.0
        %482 = vmatpush1.msra.mxu0 0.0
        %483 = vmatprep.subr.mxu0 0.0
        %484 = vmatpush1.msra.mxu0 0.0
        %485 = vmatprep.subr.mxu0 0.0
        %486 = vmatpush1.msra.mxu0 0.0
        %487 = vmatprep.subr.mxu0 0.0
        %488 = vmatpush1.msra.mxu0 0.0
        %489 = vmatprep.subr.mxu0 0.0
        %490 = vmatpush1.msra.mxu0 0.0
        %491 = vmatprep.subr.mxu0 0.0
        %492 = vmatpush1.msra.mxu0 0.0
        %493 = vmatprep.subr.mxu0 0.0
        %494 = vmatpush1.msra.mxu0 0.0
        %495 = vmatprep.subr.mxu0 0.0
        %496 = vmatpush1.msra.mxu0 0.0
        %497 = vmatprep.subr.mxu0 0.0
        %498 = vmatpush1.msra.mxu0 0.0
        %499 = vmatprep.subr.mxu0 0.0
        %500 = vmatpush1.msra.mxu0 0.0
        %501 = vmatprep.subr.mxu0 0.0
        %502 = vmatpush1.msra.mxu0 0.0
        %503 = vmatprep.subr.mxu0 0.0
        %504 = vmatpush1.msra.mxu0 0.0
        %505 = vmatprep.subr.mxu0 0.0
        %506 = vmatpush1.msra.mxu0 0.0
        %507 = vmatprep.subr.mxu0 0.0
        %508 = vmatpush1.msra.mxu0 0.0
        %509 = vmatprep.subr.mxu0 0.0
        %510 = vmatpush1.msra.mxu0 0.0
        %511 = vmatprep.subr.mxu0 0.0
        %512 = vmatpush1.msra.mxu0 0.0
        %513 = vmatprep.mubr.f32.mxu0 0.0
        %514 = vmatmul.mubr.f32.gmra.mrb[0].mxu0 %v441
        %v515 = vpop.f32.mrb[0].mxu0
        %v516 = vadd.f32 %v436, %v515
        %v517 = vpop.f32.mrb[0].mxu0
        %v518 = vadd.f32 %v438, %v517
        %519 = vdwg.mxu0
        %520 = vrot.lane.b32.xlu0 %v317, 15
        %v521 = vpop.permute.xlu0 %520
        %522 = vrot.lane.b32.xlu0 %v319, 15
        %v523 = vpop.permute.xlu0 %522
        %vm524 = vcmp.lt.s32.totalorder %v224, 15
        %v525 = vsel %vm524, %v521, %v523
        %v526 = vsel %vm524, %v523, %v521
        %v527 = vsel %vm311, 1, 0
        %v528 = vsel %vm312, 1, 0
        %v529 = vlaneseq
        %v530 = vshrl.u32 %v529, 7
        %v531 = vsub.s32 0, %v530
        %v532 = vrot.slane %v527, %v531
        %v533 = vlaneseq
        %v534 = vshrl.u32 %v533, 7
        %v535 = vsub.s32 0, %v534
        %v536 = vrot.slane %v528, %v535
        %vm537 = vcmp.eq.s32.totalorder %v532, 1
        %vm538 = vcmp.eq.s32.totalorder %v536, 1
        %v539 = vsel %vm537, %v526, 0.0
        %v540 = vsel %vm538, %v525, 0.0
        %s541 = scalar_lea.vmem %s1, 16
        %v542 = vld [vmem:[%s541] sm:$0xff]
        %v544 = vsel %vm358, %v542, 0
        %v547 = vsel %vm362, %v539, 0
        %v550 = vsel %vm362, %v540, 0
        %552 = vmatprep.subr.mxu0 %v550
        %553 = vmatpush1.msra.mxu0 %v547
        %554 = vmatprep.subr.mxu0 0.0
        %555 = vmatpush1.msra.mxu0 0.0
        %556 = vmatprep.subr.mxu0 0.0
        %557 = vmatpush1.msra.mxu0 0.0
        %558 = vmatprep.subr.mxu0 0.0
        %559 = vmatpush1.msra.mxu0 0.0
        %560 = vmatprep.subr.mxu0 0.0
        %561 = vmatpush1.msra.mxu0 0.0
        %562 = vmatprep.subr.mxu0 0.0
        %563 = vmatpush1.msra.mxu0 0.0
        %564 = vmatprep.subr.mxu0 0.0
        %565 = vmatpush1.msra.mxu0 0.0
        %566 = vmatprep.subr.mxu0 0.0
        %567 = vmatpush1.msra.mxu0 0.0
        %568 = vmatprep.subr.mxu0 0.0
        %569 = vmatpush1.msra.mxu0 0.0
        %570 = vmatprep.subr.mxu0 0.0
        %571 = vmatpush1.msra.mxu0 0.0
        %572 = vmatprep.subr.mxu0 0.0
        %573 = vmatpush1.msra.mxu0 0.0
        %574 = vmatprep.subr.mxu0 0.0
        %575 = vmatpush1.msra.mxu0 0.0
        %576 = vmatprep.subr.mxu0 0.0
        %577 = vmatpush1.msra.mxu0 0.0
        %578 = vmatprep.subr.mxu0 0.0
        %579 = vmatpush1.msra.mxu0 0.0
        %580 = vmatprep.subr.mxu0 0.0
        %581 = vmatpush1.msra.mxu0 0.0
        %582 = vmatprep.subr.mxu0 0.0
        %583 = vmatpush1.msra.mxu0 0.0
        %584 = vmatprep.subr.mxu0 0.0
        %585 = vmatpush1.msra.mxu0 0.0
        %586 = vmatprep.subr.mxu0 0.0
        %587 = vmatpush1.msra.mxu0 0.0
        %588 = vmatprep.subr.mxu0 0.0
        %589 = vmatpush1.msra.mxu0 0.0
        %590 = vmatprep.subr.mxu0 0.0
        %591 = vmatpush1.msra.mxu0 0.0
        %592 = vmatprep.subr.mxu0 0.0
        %593 = vmatpush1.msra.mxu0 0.0
        %594 = vmatprep.subr.mxu0 0.0
        %595 = vmatpush1.msra.mxu0 0.0
        %596 = vmatprep.subr.mxu0 0.0
        %597 = vmatpush1.msra.mxu0 0.0
        %598 = vmatprep.subr.mxu0 0.0
        %599 = vmatpush1.msra.mxu0 0.0
        %600 = vmatprep.subr.mxu0 0.0
        %601 = vmatpush1.msra.mxu0 0.0
        %602 = vmatprep.subr.mxu0 0.0
        %603 = vmatpush1.msra.mxu0 0.0
        %604 = vmatprep.subr.mxu0 0.0
        %605 = vmatpush1.msra.mxu0 0.0
        %606 = vmatprep.subr.mxu0 0.0
        %607 = vmatpush1.msra.mxu0 0.0
        %608 = vmatprep.subr.mxu0 0.0
        %609 = vmatpush1.msra.mxu0 0.0
        %610 = vmatprep.subr.mxu0 0.0
        %611 = vmatpush1.msra.mxu0 0.0
        %612 = vmatprep.subr.mxu0 0.0
        %613 = vmatpush1.msra.mxu0 0.0
        %614 = vmatprep.subr.mxu0 0.0
        %615 = vmatpush1.msra.mxu0 0.0
        %616 = vmatprep.mubr.f32.mxu0 0.0
        %617 = vmatmul.mubr.f32.gmra.mrb[0].mxu0 %v544
        %v618 = vpop.f32.mrb[0].mxu0
        %v619 = vadd.f32 0.0, %v618
        %v620 = vpop.f32.mrb[0].mxu0
        %v621 = vadd.f32 0.0, %v620
        %622 = vdwg.mxu0
        %v623 = vadd.f32 %v516, %v619
        %v624 = vadd.f32 %v518, %v621
        %625 = vrot.lane.b32.xlu0 %v317, 1
        %v626 = vpop.permute.xlu0 %625
        %627 = vrot.lane.b32.xlu0 %v319, 1
        %v628 = vpop.permute.xlu0 %627
        %vm629 = vcmp.lt.s32.totalorder %v224, 1
        %v630 = vsel %vm629, %v626, %v628
        %v631 = vsel %vm629, %v628, %v626
        %v632 = vsel %vm307, 1, 0
        %v633 = vlaneseq
        %v634 = vshrl.u32 %v633, 7
        %v635 = vsub.s32 0, %v634
        %v636 = vrot.slane %v632, %v635
        %vm637 = vcmp.eq.s32.totalorder %v636, 1
        %v638 = vsel %vm637, %v631, 0.0
        %v639 = vsel %vm637, %v630, 0.0
        %s640 = scalar_lea.vmem %s1, 24
        %v641 = vld [vmem:[%s640] sm:$0xff]
        %v643 = vsel %vm358, %v641, 0
        %v646 = vsel %vm362, %v638, 0
        %v649 = vsel %vm362, %v639, 0
        %651 = vmatprep.subr.mxu0 %v649
        %652 = vmatpush1.msra.mxu0 %v646
        %653 = vmatprep.subr.mxu0 0.0
        %654 = vmatpush1.msra.mxu0 0.0
        %655 = vmatprep.subr.mxu0 0.0
        %656 = vmatpush1.msra.mxu0 0.0
        %657 = vmatprep.subr.mxu0 0.0
        %658 = vmatpush1.msra.mxu0 0.0
        %659 = vmatprep.subr.mxu0 0.0
        %660 = vmatpush1.msra.mxu0 0.0
        %661 = vmatprep.subr.mxu0 0.0
        %662 = vmatpush1.msra.mxu0 0.0
        %663 = vmatprep.subr.mxu0 0.0
        %664 = vmatpush1.msra.mxu0 0.0
        %665 = vmatprep.subr.mxu0 0.0
        %666 = vmatpush1.msra.mxu0 0.0
        %667 = vmatprep.subr.mxu0 0.0
        %668 = vmatpush1.msra.mxu0 0.0
        %669 = vmatprep.subr.mxu0 0.0
        %670 = vmatpush1.msra.mxu0 0.0
        %671 = vmatprep.subr.mxu0 0.0
        %672 = vmatpush1.msra.mxu0 0.0
        %673 = vmatprep.subr.mxu0 0.0
        %674 = vmatpush1.msra.mxu0 0.0
        %675 = vmatprep.subr.mxu0 0.0
        %676 = vmatpush1.msra.mxu0 0.0
        %677 = vmatprep.subr.mxu0 0.0
        %678 = vmatpush1.msra.mxu0 0.0
        %679 = vmatprep.subr.mxu0 0.0
        %680 = vmatpush1.msra.mxu0 0.0
        %681 = vmatprep.subr.mxu0 0.0
        %682 = vmatpush1.msra.mxu0 0.0
        %683 = vmatprep.subr.mxu0 0.0
        %684 = vmatpush1.msra.mxu0 0.0
        %685 = vmatprep.subr.mxu0 0.0
        %686 = vmatpush1.msra.mxu0 0.0
        %687 = vmatprep.subr.mxu0 0.0
        %688 = vmatpush1.msra.mxu0 0.0
        %689 = vmatprep.subr.mxu0 0.0
        %690 = vmatpush1.msra.mxu0 0.0
        %691 = vmatprep.subr.mxu0 0.0
        %692 = vmatpush1.msra.mxu0 0.0
        %693 = vmatprep.subr.mxu0 0.0
        %694 = vmatpush1.msra.mxu0 0.0
        %695 = vmatprep.subr.mxu0 0.0
        %696 = vmatpush1.msra.mxu0 0.0
        %697 = vmatprep.subr.mxu0 0.0
        %698 = vmatpush1.msra.mxu0 0.0
        %699 = vmatprep.subr.mxu0 0.0
        %700 = vmatpush1.msra.mxu0 0.0
        %701 = vmatprep.subr.mxu0 0.0
        %702 = vmatpush1.msra.mxu0 0.0
        %703 = vmatprep.subr.mxu0 0.0
        %704 = vmatpush1.msra.mxu0 0.0
        %705 = vmatprep.subr.mxu0 0.0
        %706 = vmatpush1.msra.mxu0 0.0
        %707 = vmatprep.subr.mxu0 0.0
        %708 = vmatpush1.msra.mxu0 0.0
        %709 = vmatprep.subr.mxu0 0.0
        %710 = vmatpush1.msra.mxu0 0.0
        %711 = vmatprep.subr.mxu0 0.0
        %712 = vmatpush1.msra.mxu0 0.0
        %713 = vmatprep.subr.mxu0 0.0
        %714 = vmatpush1.msra.mxu0 0.0
        %715 = vmatprep.mubr.f32.mxu0 0.0
        %716 = vmatmul.mubr.f32.gmra.mrb[0].mxu0 %v643
        %v717 = vpop.f32.mrb[0].mxu0
        %v718 = vadd.f32 0.0, %v717
        %v719 = vpop.f32.mrb[0].mxu0
        %v720 = vadd.f32 0.0, %v719
        %721 = vdwg.mxu0
        %v722 = vadd.f32 %v623, %v718
        %v723 = vadd.f32 %v624, %v720
        %s724 = scalar_lea.vmem %s1, 32
        %v725 = vld [vmem:[%s724] sm:$0xff]
        %v727 = vsel %vm358, %v725, 0
        %v729 = vsel %vm362, %v317, 0
        %v731 = vsel %vm362, %v319, 0
        %733 = vmatprep.subr.mxu0 %v731
        %734 = vmatpush1.msra.mxu0 %v729
        %735 = vmatprep.subr.mxu0 0.0
        %736 = vmatpush1.msra.mxu0 0.0
        %737 = vmatprep.subr.mxu0 0.0
        %738 = vmatpush1.msra.mxu0 0.0
        %739 = vmatprep.subr.mxu0 0.0
        %740 = vmatpush1.msra.mxu0 0.0
        %741 = vmatprep.subr.mxu0 0.0
        %742 = vmatpush1.msra.mxu0 0.0
        %743 = vmatprep.subr.mxu0 0.0
        %744 = vmatpush1.msra.mxu0 0.0
        %745 = vmatprep.subr.mxu0 0.0
        %746 = vmatpush1.msra.mxu0 0.0
        %747 = vmatprep.subr.mxu0 0.0
        %748 = vmatpush1.msra.mxu0 0.0
        %749 = vmatprep.subr.mxu0 0.0
        %750 = vmatpush1.msra.mxu0 0.0
        %751 = vmatprep.subr.mxu0 0.0
        %752 = vmatpush1.msra.mxu0 0.0
        %753 = vmatprep.subr.mxu0 0.0
        %754 = vmatpush1.msra.mxu0 0.0
        %755 = vmatprep.subr.mxu0 0.0
        %756 = vmatpush1.msra.mxu0 0.0
        %757 = vmatprep.subr.mxu0 0.0
        %758 = vmatpush1.msra.mxu0 0.0
        %759 = vmatprep.subr.mxu0 0.0
        %760 = vmatpush1.msra.mxu0 0.0
        %761 = vmatprep.subr.mxu0 0.0
        %762 = vmatpush1.msra.mxu0 0.0
        %763 = vmatprep.subr.mxu0 0.0
        %764 = vmatpush1.msra.mxu0 0.0
        %765 = vmatprep.subr.mxu0 0.0
        %766 = vmatpush1.msra.mxu0 0.0
        %767 = vmatprep.subr.mxu0 0.0
        %768 = vmatpush1.msra.mxu0 0.0
        %769 = vmatprep.subr.mxu0 0.0
        %770 = vmatpush1.msra.mxu0 0.0
        %771 = vmatprep.subr.mxu0 0.0
        %772 = vmatpush1.msra.mxu0 0.0
        %773 = vmatprep.subr.mxu0 0.0
        %774 = vmatpush1.msra.mxu0 0.0
        %775 = vmatprep.subr.mxu0 0.0
        %776 = vmatpush1.msra.mxu0 0.0
        %777 = vmatprep.subr.mxu0 0.0
        %778 = vmatpush1.msra.mxu0 0.0
        %779 = vmatprep.subr.mxu0 0.0
        %780 = vmatpush1.msra.mxu0 0.0
        %781 = vmatprep.subr.mxu0 0.0
        %782 = vmatpush1.msra.mxu0 0.0
        %783 = vmatprep.subr.mxu0 0.0
        %784 = vmatpush1.msra.mxu0 0.0
        %785 = vmatprep.subr.mxu0 0.0
        %786 = vmatpush1.msra.mxu0 0.0
        %787 = vmatprep.subr.mxu0 0.0
        %788 = vmatpush1.msra.mxu0 0.0
        %789 = vmatprep.subr.mxu0 0.0
        %790 = vmatpush1.msra.mxu0 0.0
        %791 = vmatprep.subr.mxu0 0.0
        %792 = vmatpush1.msra.mxu0 0.0
        %793 = vmatprep.subr.mxu0 0.0
        %794 = vmatpush1.msra.mxu0 0.0
        %795 = vmatprep.subr.mxu0 0.0
        %796 = vmatpush1.msra.mxu0 0.0
        %797 = vmatprep.mubr.f32.mxu0 0.0
        %798 = vmatmul.mubr.f32.gmra.mrb[0].mxu0 %v727
        %v799 = vpop.f32.mrb[0].mxu0
        %v800 = vadd.f32 0.0, %v799
        %v801 = vpop.f32.mrb[0].mxu0
        %v802 = vadd.f32 0.0, %v801
        %803 = vdwg.mxu0
        %v804 = vadd.f32 %v722, %v800
        %v805 = vadd.f32 %v723, %v802
        %806 = vrot.lane.b32.xlu0 %v317, 127
        %v807 = vpop.permute.xlu0 %806
        %808 = vrot.lane.b32.xlu0 %v319, 127
        %v809 = vpop.permute.xlu0 %808
        %vm810 = vcmp.lt.s32.totalorder %v224, 127
        %v811 = vsel %vm810, %v807, %v809
        %v812 = vsel %vm810, %v809, %v807
        %v813 = vsel %vm308, 1, 0
        %v814 = vlaneseq
        %v815 = vshrl.u32 %v814, 7
        %v816 = vsub.s32 0, %v815
        %v817 = vrot.slane %v813, %v816
        %vm818 = vcmp.eq.s32.totalorder %v817, 1
        %v819 = vsel %vm818, %v811, 0.0
        %v820 = vsel %vm818, %v812, 0.0
        %s821 = scalar_lea.vmem %s1, 40
        %v822 = vld [vmem:[%s821] sm:$0xff]
        %v824 = vsel %vm358, %v822, 0
        %v827 = vsel %vm362, %v819, 0
        %v830 = vsel %vm362, %v820, 0
        %832 = vmatprep.subr.mxu0 %v830
        %833 = vmatpush1.msra.mxu0 %v827
        %834 = vmatprep.subr.mxu0 0.0
        %835 = vmatpush1.msra.mxu0 0.0
        %836 = vmatprep.subr.mxu0 0.0
        %837 = vmatpush1.msra.mxu0 0.0
        %838 = vmatprep.subr.mxu0 0.0
        %839 = vmatpush1.msra.mxu0 0.0
        %840 = vmatprep.subr.mxu0 0.0
        %841 = vmatpush1.msra.mxu0 0.0
        %842 = vmatprep.subr.mxu0 0.0
        %843 = vmatpush1.msra.mxu0 0.0
        %844 = vmatprep.subr.mxu0 0.0
        %845 = vmatpush1.msra.mxu0 0.0
        %846 = vmatprep.subr.mxu0 0.0
        %847 = vmatpush1.msra.mxu0 0.0
        %848 = vmatprep.subr.mxu0 0.0
        %849 = vmatpush1.msra.mxu0 0.0
        %850 = vmatprep.subr.mxu0 0.0
        %851 = vmatpush1.msra.mxu0 0.0
        %852 = vmatprep.subr.mxu0 0.0
        %853 = vmatpush1.msra.mxu0 0.0
        %854 = vmatprep.subr.mxu0 0.0
        %855 = vmatpush1.msra.mxu0 0.0
        %856 = vmatprep.subr.mxu0 0.0
        %857 = vmatpush1.msra.mxu0 0.0
        %858 = vmatprep.subr.mxu0 0.0
        %859 = vmatpush1.msra.mxu0 0.0
        %860 = vmatprep.subr.mxu0 0.0
        %861 = vmatpush1.msra.mxu0 0.0
        %862 = vmatprep.subr.mxu0 0.0
        %863 = vmatpush1.msra.mxu0 0.0
        %864 = vmatprep.subr.mxu0 0.0
        %865 = vmatpush1.msra.mxu0 0.0
        %866 = vmatprep.subr.mxu0 0.0
        %867 = vmatpush1.msra.mxu0 0.0
        %868 = vmatprep.subr.mxu0 0.0
        %869 = vmatpush1.msra.mxu0 0.0
        %870 = vmatprep.subr.mxu0 0.0
        %871 = vmatpush1.msra.mxu0 0.0
        %872 = vmatprep.subr.mxu0 0.0
        %873 = vmatpush1.msra.mxu0 0.0
        %874 = vmatprep.subr.mxu0 0.0
        %875 = vmatpush1.msra.mxu0 0.0
        %876 = vmatprep.subr.mxu0 0.0
        %877 = vmatpush1.msra.mxu0 0.0
        %878 = vmatprep.subr.mxu0 0.0
        %879 = vmatpush1.msra.mxu0 0.0
        %880 = vmatprep.subr.mxu0 0.0
        %881 = vmatpush1.msra.mxu0 0.0
        %882 = vmatprep.subr.mxu0 0.0
        %883 = vmatpush1.msra.mxu0 0.0
        %884 = vmatprep.subr.mxu0 0.0
        %885 = vmatpush1.msra.mxu0 0.0
        %886 = vmatprep.subr.mxu0 0.0
        %887 = vmatpush1.msra.mxu0 0.0
        %888 = vmatprep.subr.mxu0 0.0
        %889 = vmatpush1.msra.mxu0 0.0
        %890 = vmatprep.subr.mxu0 0.0
        %891 = vmatpush1.msra.mxu0 0.0
        %892 = vmatprep.subr.mxu0 0.0
        %893 = vmatpush1.msra.mxu0 0.0
        %894 = vmatprep.subr.mxu0 0.0
        %895 = vmatpush1.msra.mxu0 0.0
        %896 = vmatprep.mubr.f32.mxu0 0.0
        %897 = vmatmul.mubr.f32.gmra.mrb[0].mxu0 %v824
        %v898 = vpop.f32.mrb[0].mxu0
        %v899 = vadd.f32 0.0, %v898
        %v900 = vpop.f32.mrb[0].mxu0
        %v901 = vadd.f32 0.0, %v900
        %902 = vdwg.mxu0
        %v903 = vadd.f32 %v804, %v899
        %v904 = vadd.f32 %v805, %v901
        %905 = vrot.lane.b32.xlu0 %v317, 113
        %v906 = vpop.permute.xlu0 %905
        %907 = vrot.lane.b32.xlu0 %v319, 113
        %v908 = vpop.permute.xlu0 %907
        %vm909 = vcmp.lt.s32.totalorder %v224, 113
        %v910 = vsel %vm909, %v906, %v908
        %v911 = vsel %vm909, %v908, %v906
        %v912 = vsel %vm313, 1, 0
        %v913 = vsel %vm314, 1, 0
        %v914 = vlaneseq
        %v915 = vshrl.u32 %v914, 7
        %v916 = vsub.s32 0, %v915
        %v917 = vrot.slane %v912, %v916
        %v918 = vlaneseq
        %v919 = vshrl.u32 %v918, 7
        %v920 = vsub.s32 0, %v919
        %v921 = vrot.slane %v913, %v920
        %vm922 = vcmp.eq.s32.totalorder %v917, 1
        %vm923 = vcmp.eq.s32.totalorder %v921, 1
        %v924 = vsel %vm922, %v910, 0.0
        %v925 = vsel %vm923, %v911, 0.0
        %s926 = scalar_lea.vmem %s1, 48
        %v927 = vld [vmem:[%s926] sm:$0xff]
        %v929 = vsel %vm358, %v927, 0
        %v932 = vsel %vm362, %v924, 0
        %v935 = vsel %vm362, %v925, 0
        %937 = vmatprep.subr.mxu0 %v935
        %938 = vmatpush1.msra.mxu0 %v932
        %939 = vmatprep.subr.mxu0 0.0
        %940 = vmatpush1.msra.mxu0 0.0
        %941 = vmatprep.subr.mxu0 0.0
        %942 = vmatpush1.msra.mxu0 0.0
        %943 = vmatprep.subr.mxu0 0.0
        %944 = vmatpush1.msra.mxu0 0.0
        %945 = vmatprep.subr.mxu0 0.0
        %946 = vmatpush1.msra.mxu0 0.0
        %947 = vmatprep.subr.mxu0 0.0
        %948 = vmatpush1.msra.mxu0 0.0
        %949 = vmatprep.subr.mxu0 0.0
        %950 = vmatpush1.msra.mxu0 0.0
        %951 = vmatprep.subr.mxu0 0.0
        %952 = vmatpush1.msra.mxu0 0.0
        %953 = vmatprep.subr.mxu0 0.0
        %954 = vmatpush1.msra.mxu0 0.0
        %955 = vmatprep.subr.mxu0 0.0
        %956 = vmatpush1.msra.mxu0 0.0
        %957 = vmatprep.subr.mxu0 0.0
        %958 = vmatpush1.msra.mxu0 0.0
        %959 = vmatprep.subr.mxu0 0.0
        %960 = vmatpush1.msra.mxu0 0.0
        %961 = vmatprep.subr.mxu0 0.0
        %962 = vmatpush1.msra.mxu0 0.0
        %963 = vmatprep.subr.mxu0 0.0
        %964 = vmatpush1.msra.mxu0 0.0
        %965 = vmatprep.subr.mxu0 0.0
        %966 = vmatpush1.msra.mxu0 0.0
        %967 = vmatprep.subr.mxu0 0.0
        %968 = vmatpush1.msra.mxu0 0.0
        %969 = vmatprep.subr.mxu0 0.0
        %970 = vmatpush1.msra.mxu0 0.0
        %971 = vmatprep.subr.mxu0 0.0
        %972 = vmatpush1.msra.mxu0 0.0
        %973 = vmatprep.subr.mxu0 0.0
        %974 = vmatpush1.msra.mxu0 0.0
        %975 = vmatprep.subr.mxu0 0.0
        %976 = vmatpush1.msra.mxu0 0.0
        %977 = vmatprep.subr.mxu0 0.0
        %978 = vmatpush1.msra.mxu0 0.0
        %979 = vmatprep.subr.mxu0 0.0
        %980 = vmatpush1.msra.mxu0 0.0
        %981 = vmatprep.subr.mxu0 0.0
        %982 = vmatpush1.msra.mxu0 0.0
        %983 = vmatprep.subr.mxu0 0.0
        %984 = vmatpush1.msra.mxu0 0.0
        %985 = vmatprep.subr.mxu0 0.0
        %986 = vmatpush1.msra.mxu0 0.0
        %987 = vmatprep.subr.mxu0 0.0
        %988 = vmatpush1.msra.mxu0 0.0
        %989 = vmatprep.subr.mxu0 0.0
        %990 = vmatpush1.msra.mxu0 0.0
        %991 = vmatprep.subr.mxu0 0.0
        %992 = vmatpush1.msra.mxu0 0.0
        %993 = vmatprep.subr.mxu0 0.0
        %994 = vmatpush1.msra.mxu0 0.0
        %995 = vmatprep.subr.mxu0 0.0
        %996 = vmatpush1.msra.mxu0 0.0
        %997 = vmatprep.subr.mxu0 0.0
        %998 = vmatpush1.msra.mxu0 0.0
        %999 = vmatprep.subr.mxu0 0.0
        %1000 = vmatpush1.msra.mxu0 0.0
        %1001 = vmatprep.mubr.f32.mxu0 0.0
        %1002 = vmatmul.mubr.f32.gmra.mrb[0].mxu0 %v929
        %v1003 = vpop.f32.mrb[0].mxu0
        %v1004 = vadd.f32 0.0, %v1003
        %v1005 = vpop.f32.mrb[0].mxu0
        %v1006 = vadd.f32 0.0, %v1005
        %1007 = vdwg.mxu0
        %v1008 = vadd.f32 %v903, %v1004
        %v1009 = vadd.f32 %v904, %v1006
        %1010 = vrot.lane.b32.xlu0 %v317, 112
        %v1011 = vpop.permute.xlu0 %1010
        %1012 = vrot.lane.b32.xlu0 %v319, 112
        %v1013 = vpop.permute.xlu0 %1012
        %vm1014 = vcmp.lt.s32.totalorder %v224, 112
        %v1015 = vsel %vm1014, %v1011, %v1013
        %v1016 = vsel %vm1014, %v1013, %v1011
        %v1017 = vsel %vm305, 1, 0
        %v1018 = vsel %vm306, 1, 0
        %vm1019 = vcmp.eq.s32.totalorder %v1017, 1
        %vm1020 = vcmp.eq.s32.totalorder %v1018, 1
        %v1021 = vsel %vm1019, %v1015, 0.0
        %v1022 = vsel %vm1020, %v1016, 0.0
        %s1023 = scalar_lea.vmem %s1, 56
        %v1024 = vld [vmem:[%s1023] sm:$0xff]
        %v1026 = vsel %vm358, %v1024, 0
        %v1029 = vsel %vm362, %v1021, 0
        %v1032 = vsel %vm362, %v1022, 0
        %1034 = vmatprep.subr.mxu0 %v1032
        %1035 = vmatpush1.msra.mxu0 %v1029
        %1036 = vmatprep.subr.mxu0 0.0
        %1037 = vmatpush1.msra.mxu0 0.0
        %1038 = vmatprep.subr.mxu0 0.0
        %1039 = vmatpush1.msra.mxu0 0.0
        %1040 = vmatprep.subr.mxu0 0.0
        %1041 = vmatpush1.msra.mxu0 0.0
        %1042 = vmatprep.subr.mxu0 0.0
        %1043 = vmatpush1.msra.mxu0 0.0
        %1044 = vmatprep.subr.mxu0 0.0
        %1045 = vmatpush1.msra.mxu0 0.0
        %1046 = vmatprep.subr.mxu0 0.0
        %1047 = vmatpush1.msra.mxu0 0.0
        %1048 = vmatprep.subr.mxu0 0.0
        %1049 = vmatpush1.msra.mxu0 0.0
        %1050 = vmatprep.subr.mxu0 0.0
        %1051 = vmatpush1.msra.mxu0 0.0
        %1052 = vmatprep.subr.mxu0 0.0
        %1053 = vmatpush1.msra.mxu0 0.0
        %1054 = vmatprep.subr.mxu0 0.0
        %1055 = vmatpush1.msra.mxu0 0.0
        %1056 = vmatprep.subr.mxu0 0.0
        %1057 = vmatpush1.msra.mxu0 0.0
        %1058 = vmatprep.subr.mxu0 0.0
        %1059 = vmatpush1.msra.mxu0 0.0
        %1060 = vmatprep.subr.mxu0 0.0
        %1061 = vmatpush1.msra.mxu0 0.0
        %1062 = vmatprep.subr.mxu0 0.0
        %1063 = vmatpush1.msra.mxu0 0.0
        %1064 = vmatprep.subr.mxu0 0.0
        %1065 = vmatpush1.msra.mxu0 0.0
        %1066 = vmatprep.subr.mxu0 0.0
        %1067 = vmatpush1.msra.mxu0 0.0
        %1068 = vmatprep.subr.mxu0 0.0
        %1069 = vmatpush1.msra.mxu0 0.0
        %1070 = vmatprep.subr.mxu0 0.0
        %1071 = vmatpush1.msra.mxu0 0.0
        %1072 = vmatprep.subr.mxu0 0.0
        %1073 = vmatpush1.msra.mxu0 0.0
        %1074 = vmatprep.subr.mxu0 0.0
        %1075 = vmatpush1.msra.mxu0 0.0
        %1076 = vmatprep.subr.mxu0 0.0
        %1077 = vmatpush1.msra.mxu0 0.0
        %1078 = vmatprep.subr.mxu0 0.0
        %1079 = vmatpush1.msra.mxu0 0.0
        %1080 = vmatprep.subr.mxu0 0.0
        %1081 = vmatpush1.msra.mxu0 0.0
        %1082 = vmatprep.subr.mxu0 0.0
        %1083 = vmatpush1.msra.mxu0 0.0
        %1084 = vmatprep.subr.mxu0 0.0
        %1085 = vmatpush1.msra.mxu0 0.0
        %1086 = vmatprep.subr.mxu0 0.0
        %1087 = vmatpush1.msra.mxu0 0.0
        %1088 = vmatprep.subr.mxu0 0.0
        %1089 = vmatpush1.msra.mxu0 0.0
        %1090 = vmatprep.subr.mxu0 0.0
        %1091 = vmatpush1.msra.mxu0 0.0
        %1092 = vmatprep.subr.mxu0 0.0
        %1093 = vmatpush1.msra.mxu0 0.0
        %1094 = vmatprep.subr.mxu0 0.0
        %1095 = vmatpush1.msra.mxu0 0.0
        %1096 = vmatprep.subr.mxu0 0.0
        %1097 = vmatpush1.msra.mxu0 0.0
        %1098 = vmatprep.mubr.f32.mxu0 0.0
        %1099 = vmatmul.mubr.f32.gmra.mrb[0].mxu0 %v1026
        %v1100 = vpop.f32.mrb[0].mxu0
        %v1101 = vadd.f32 0.0, %v1100
        %v1102 = vpop.f32.mrb[0].mxu0
        %v1103 = vadd.f32 0.0, %v1102
        %1104 = vdwg.mxu0
        %v1105 = vadd.f32 %v1008, %v1101
        %v1106 = vadd.f32 %v1009, %v1103
        %1107 = vrot.lane.b32.xlu0 %v317, 111
        %v1108 = vpop.permute.xlu0 %1107
        %1109 = vrot.lane.b32.xlu0 %v319, 111
        %v1110 = vpop.permute.xlu0 %1109
        %vm1111 = vcmp.lt.s32.totalorder %v224, 111
        %v1112 = vsel %vm1111, %v1108, %v1110
        %v1113 = vsel %vm1111, %v1110, %v1108
        %v1114 = vsel %vm315, 1, 0
        %v1115 = vsel %vm316, 1, 0
        %v1116 = vlaneseq
        %v1117 = vshrl.u32 %v1116, 7
        %v1118 = vsub.s32 0, %v1117
        %v1119 = vrot.slane %v1114, %v1118
        %v1120 = vlaneseq
        %v1121 = vshrl.u32 %v1120, 7
        %v1122 = vsub.s32 0, %v1121
        %v1123 = vrot.slane %v1115, %v1122
        %vm1124 = vcmp.eq.s32.totalorder %v1119, 1
        %vm1125 = vcmp.eq.s32.totalorder %v1123, 1
        %v1126 = vsel %vm1124, %v1112, 0.0
        %v1127 = vsel %vm1125, %v1113, 0.0
        %s1128 = scalar_lea.vmem %s1, 64
        %v1129 = vld [vmem:[%s1128] sm:$0xff]
        %v1131 = vsel %vm358, %v1129, 0
        %v1134 = vsel %vm362, %v1126, 0
        %v1137 = vsel %vm362, %v1127, 0
        %1139 = vmatprep.subr.mxu0 %v1137
        %1140 = vmatpush1.msra.mxu0 %v1134
        %1141 = vmatprep.subr.mxu0 0.0
        %1142 = vmatpush1.msra.mxu0 0.0
        %1143 = vmatprep.subr.mxu0 0.0
        %1144 = vmatpush1.msra.mxu0 0.0
        %1145 = vmatprep.subr.mxu0 0.0
        %1146 = vmatpush1.msra.mxu0 0.0
        %1147 = vmatprep.subr.mxu0 0.0
        %1148 = vmatpush1.msra.mxu0 0.0
        %1149 = vmatprep.subr.mxu0 0.0
        %1150 = vmatpush1.msra.mxu0 0.0
        %1151 = vmatprep.subr.mxu0 0.0
        %1152 = vmatpush1.msra.mxu0 0.0
        %1153 = vmatprep.subr.mxu0 0.0
        %1154 = vmatpush1.msra.mxu0 0.0
        %1155 = vmatprep.subr.mxu0 0.0
        %1156 = vmatpush1.msra.mxu0 0.0
        %1157 = vmatprep.subr.mxu0 0.0
        %1158 = vmatpush1.msra.mxu0 0.0
        %1159 = vmatprep.subr.mxu0 0.0
        %1160 = vmatpush1.msra.mxu0 0.0
        %1161 = vmatprep.subr.mxu0 0.0
        %1162 = vmatpush1.msra.mxu0 0.0
        %1163 = vmatprep.subr.mxu0 0.0
        %1164 = vmatpush1.msra.mxu0 0.0
        %1165 = vmatprep.subr.mxu0 0.0
        %1166 = vmatpush1.msra.mxu0 0.0
        %1167 = vmatprep.subr.mxu0 0.0
        %1168 = vmatpush1.msra.mxu0 0.0
        %1169 = vmatprep.subr.mxu0 0.0
        %1170 = vmatpush1.msra.mxu0 0.0
        %1171 = vmatprep.subr.mxu0 0.0
        %1172 = vmatpush1.msra.mxu0 0.0
        %1173 = vmatprep.subr.mxu0 0.0
        %1174 = vmatpush1.msra.mxu0 0.0
        %1175 = vmatprep.subr.mxu0 0.0
        %1176 = vmatpush1.msra.mxu0 0.0
        %1177 = vmatprep.subr.mxu0 0.0
        %1178 = vmatpush1.msra.mxu0 0.0
        %1179 = vmatprep.subr.mxu0 0.0
        %1180 = vmatpush1.msra.mxu0 0.0
        %1181 = vmatprep.subr.mxu0 0.0
        %1182 = vmatpush1.msra.mxu0 0.0
        %1183 = vmatprep.subr.mxu0 0.0
        %1184 = vmatpush1.msra.mxu0 0.0
        %1185 = vmatprep.subr.mxu0 0.0
        %1186 = vmatpush1.msra.mxu0 0.0
        %1187 = vmatprep.subr.mxu0 0.0
        %1188 = vmatpush1.msra.mxu0 0.0
        %1189 = vmatprep.subr.mxu0 0.0
        %1190 = vmatpush1.msra.mxu0 0.0
        %1191 = vmatprep.subr.mxu0 0.0
        %1192 = vmatpush1.msra.mxu0 0.0
        %1193 = vmatprep.subr.mxu0 0.0
        %1194 = vmatpush1.msra.mxu0 0.0
        %1195 = vmatprep.subr.mxu0 0.0
        %1196 = vmatpush1.msra.mxu0 0.0
        %1197 = vmatprep.subr.mxu0 0.0
        %1198 = vmatpush1.msra.mxu0 0.0
        %1199 = vmatprep.subr.mxu0 0.0
        %1200 = vmatpush1.msra.mxu0 0.0
        %1201 = vmatprep.subr.mxu0 0.0
        %1202 = vmatpush1.msra.mxu0 0.0
        %1203 = vmatprep.mubr.f32.mxu0 0.0
        %1204 = vmatmul.mubr.f32.gmra.mrb[0].mxu0 %v1131
        %v1205 = vpop.f32.mrb[0].mxu0
        %v1206 = vadd.f32 0.0, %v1205
        %v1207 = vpop.f32.mrb[0].mxu0
        %v1208 = vadd.f32 0.0, %v1207
        %1209 = vdwg.mxu0
        %v1210 = vadd.f32 %v1105, %v1206
        %v1211 = vadd.f32 %v1106, %v1208
        %v1212 = vld [vmem:[%s2] sm:$0xff]
        %1214 = vset.pattern.permute.xlu0 0
        %1215 = vperm.xlu0 %1214, %v1212
        %v1216 = vpop.permute.xlu0 %1215
        %v1218 = vadd.f32 %v1210, %v1216
        %v1219 = vadd.f32 %v1211, %v1216
        %v1220 = vmax.f32 %v1218, 0.0
        %v1221 = vmax.f32 %v1219, 0.0
        %1222 = vrot.lane.b32.xlu0 %v1220, 17
        %v1223 = vpop.permute.xlu0 %1222
        %1224 = vrot.lane.b32.xlu0 %v1221, 17
        %v1225 = vpop.permute.xlu0 %1224
        %v1226 = vsel %vm325, %v1223, %v1225
        %v1227 = vsel %vm325, %v1225, %v1223
        %v1228 = vsel %vm338, %v1227, 0.0
        %v1229 = vsel %vm339, %v1226, 0.0
        %v1230 = vld [vmem:[%s3] sm:$0xff]
        %1231 = vrot.lane.b32.xlu0 %v1220, 16
        %v1232 = vpop.permute.xlu0 %1231
        %1233 = vrot.lane.b32.xlu0 %v1221, 16
        %v1234 = vpop.permute.xlu0 %1233
        %v1235 = vsel %vm347, %v1232, %v1234
        %v1236 = vsel %vm347, %v1234, %v1232
        %v1237 = vsel %vm352, %v1236, 0.0
        %v1238 = vsel %vm353, %v1235, 0.0
        %s1239 = scalar_lea.vmem %s3, 8
        %v1240 = vld [vmem:[%s1239] sm:$0xff]
        %vm1241 = vcmask 64512
        %v1243 = vsel %vm1241, %v1240, 0
        %1245 = vmatprep.subr.mxu0 %v1238
        %1246 = vmatpush1.msra.mxu0 %v1237
        %1247 = vmatprep.subr.mxu0 0.0
        %1248 = vmatpush1.msra.mxu0 0.0
        %1249 = vmatprep.subr.mxu0 0.0
        %1250 = vmatpush1.msra.mxu0 0.0
        %1251 = vmatprep.subr.mxu0 0.0
        %1252 = vmatpush1.msra.mxu0 0.0
        %1253 = vmatprep.subr.mxu0 0.0
        %1254 = vmatpush1.msra.mxu0 0.0
        %1255 = vmatprep.subr.mxu0 0.0
        %1256 = vmatpush1.msra.mxu0 0.0
        %1257 = vmatprep.subr.mxu0 0.0
        %1258 = vmatpush1.msra.mxu0 0.0
        %1259 = vmatprep.subr.mxu0 0.0
        %1260 = vmatpush1.msra.mxu0 0.0
        %1261 = vmatprep.subr.mxu0 0.0
        %1262 = vmatpush1.msra.mxu0 0.0
        %1263 = vmatprep.subr.mxu0 0.0
        %1264 = vmatpush1.msra.mxu0 0.0
        %1265 = vmatprep.subr.mxu0 0.0
        %1266 = vmatpush1.msra.mxu0 0.0
        %1267 = vmatprep.subr.mxu0 0.0
        %1268 = vmatpush1.msra.mxu0 0.0
        %1269 = vmatprep.subr.mxu0 0.0
        %1270 = vmatpush1.msra.mxu0 0.0
        %1271 = vmatprep.subr.mxu0 0.0
        %1272 = vmatpush1.msra.mxu0 0.0
        %1273 = vmatprep.subr.mxu0 0.0
        %1274 = vmatpush1.msra.mxu0 0.0
        %1275 = vmatprep.subr.mxu0 0.0
        %1276 = vmatpush1.msra.mxu0 0.0
        %1277 = vmatprep.subr.mxu0 0.0
        %1278 = vmatpush1.msra.mxu0 0.0
        %1279 = vmatprep.subr.mxu0 0.0
        %1280 = vmatpush1.msra.mxu0 0.0
        %1281 = vmatprep.subr.mxu0 0.0
        %1282 = vmatpush1.msra.mxu0 0.0
        %1283 = vmatprep.subr.mxu0 0.0
        %1284 = vmatpush1.msra.mxu0 0.0
        %1285 = vmatprep.subr.mxu0 0.0
        %1286 = vmatpush1.msra.mxu0 0.0
        %1287 = vmatprep.subr.mxu0 0.0
        %1288 = vmatpush1.msra.mxu0 0.0
        %1289 = vmatprep.subr.mxu0 0.0
        %1290 = vmatpush1.msra.mxu0 0.0
        %1291 = vmatprep.subr.mxu0 0.0
        %1292 = vmatpush1.msra.mxu0 0.0
        %1293 = vmatprep.subr.mxu0 0.0
        %1294 = vmatpush1.msra.mxu0 0.0
        %1295 = vmatprep.subr.mxu0 0.0
        %1296 = vmatpush1.msra.mxu0 0.0
        %1297 = vmatprep.subr.mxu0 0.0
        %1298 = vmatpush1.msra.mxu0 0.0
        %1299 = vmatprep.subr.mxu0 0.0
        %1300 = vmatpush1.msra.mxu0 0.0
        %1301 = vmatprep.subr.mxu0 0.0
        %1302 = vmatpush1.msra.mxu0 0.0
        %1303 = vmatprep.subr.mxu0 0.0
        %1304 = vmatpush1.msra.mxu0 0.0
        %1305 = vmatprep.subr.mxu0 0.0
        %1306 = vmatpush1.msra.mxu0 0.0
        %1307 = vmatprep.subr.mxu0 0.0
        %1308 = vmatpush1.msra.mxu0 0.0
        %1309 = vmatprep.mubr.f32.mxu0 0.0
        %1310 = vmatmul.mubr.f32.gmra.mrb[0].mxu0 %v1243
        %v1311 = vpop.f32.mrb[0].mxu0
        %v1312 = vadd.f32 0.0, %v1311
        %v1313 = vpop.f32.mrb[0].mxu0
        %v1314 = vadd.f32 0.0, %v1313
        %1315 = vdwg.mxu0
        %v1317 = vsel %vm1241, %v1230, 0
        %1319 = vmatprep.subr.mxu0 %v1229
        %1320 = vmatpush1.msra.mxu0 %v1228
        %1321 = vmatprep.subr.mxu0 0.0
        %1322 = vmatpush1.msra.mxu0 0.0
        %1323 = vmatprep.subr.mxu0 0.0
        %1324 = vmatpush1.msra.mxu0 0.0
        %1325 = vmatprep.subr.mxu0 0.0
        %1326 = vmatpush1.msra.mxu0 0.0
        %1327 = vmatprep.subr.mxu0 0.0
        %1328 = vmatpush1.msra.mxu0 0.0
        %1329 = vmatprep.subr.mxu0 0.0
        %1330 = vmatpush1.msra.mxu0 0.0
        %1331 = vmatprep.subr.mxu0 0.0
        %1332 = vmatpush1.msra.mxu0 0.0
        %1333 = vmatprep.subr.mxu0 0.0
        %1334 = vmatpush1.msra.mxu0 0.0
        %1335 = vmatprep.subr.mxu0 0.0
        %1336 = vmatpush1.msra.mxu0 0.0
        %1337 = vmatprep.subr.mxu0 0.0
        %1338 = vmatpush1.msra.mxu0 0.0
        %1339 = vmatprep.subr.mxu0 0.0
        %1340 = vmatpush1.msra.mxu0 0.0
        %1341 = vmatprep.subr.mxu0 0.0
        %1342 = vmatpush1.msra.mxu0 0.0
        %1343 = vmatprep.subr.mxu0 0.0
        %1344 = vmatpush1.msra.mxu0 0.0
        %1345 = vmatprep.subr.mxu0 0.0
        %1346 = vmatpush1.msra.mxu0 0.0
        %1347 = vmatprep.subr.mxu0 0.0
        %1348 = vmatpush1.msra.mxu0 0.0
        %1349 = vmatprep.subr.mxu0 0.0
        %1350 = vmatpush1.msra.mxu0 0.0
        %1351 = vmatprep.subr.mxu0 0.0
        %1352 = vmatpush1.msra.mxu0 0.0
        %1353 = vmatprep.subr.mxu0 0.0
        %1354 = vmatpush1.msra.mxu0 0.0
        %1355 = vmatprep.subr.mxu0 0.0
        %1356 = vmatpush1.msra.mxu0 0.0
        %1357 = vmatprep.subr.mxu0 0.0
        %1358 = vmatpush1.msra.mxu0 0.0
        %1359 = vmatprep.subr.mxu0 0.0
        %1360 = vmatpush1.msra.mxu0 0.0
        %1361 = vmatprep.subr.mxu0 0.0
        %1362 = vmatpush1.msra.mxu0 0.0
        %1363 = vmatprep.subr.mxu0 0.0
        %1364 = vmatpush1.msra.mxu0 0.0
        %1365 = vmatprep.subr.mxu0 0.0
        %1366 = vmatpush1.msra.mxu0 0.0
        %1367 = vmatprep.subr.mxu0 0.0
        %1368 = vmatpush1.msra.mxu0 0.0
        %1369 = vmatprep.subr.mxu0 0.0
        %1370 = vmatpush1.msra.mxu0 0.0
        %1371 = vmatprep.subr.mxu0 0.0
        %1372 = vmatpush1.msra.mxu0 0.0
        %1373 = vmatprep.subr.mxu0 0.0
        %1374 = vmatpush1.msra.mxu0 0.0
        %1375 = vmatprep.subr.mxu0 0.0
        %1376 = vmatpush1.msra.mxu0 0.0
        %1377 = vmatprep.subr.mxu0 0.0
        %1378 = vmatpush1.msra.mxu0 0.0
        %1379 = vmatprep.subr.mxu0 0.0
        %1380 = vmatpush1.msra.mxu0 0.0
        %1381 = vmatprep.subr.mxu0 0.0
        %1382 = vmatpush1.msra.mxu0 0.0
        %1383 = vmatprep.mubr.f32.mxu0 0.0
        %1384 = vmatmul.mubr.f32.gmra.mrb[0].mxu0 %v1317
        %v1385 = vpop.f32.mrb[0].mxu0
        %v1386 = vadd.f32 %v1312, %v1385
        %v1387 = vpop.f32.mrb[0].mxu0
        %v1388 = vadd.f32 %v1314, %v1387
        %1389 = vdwg.mxu0
        %1390 = vrot.lane.b32.xlu0 %v1220, 15
        %v1391 = vpop.permute.xlu0 %1390
        %1392 = vrot.lane.b32.xlu0 %v1221, 15
        %v1393 = vpop.permute.xlu0 %1392
        %v1394 = vsel %vm524, %v1391, %v1393
        %v1395 = vsel %vm524, %v1393, %v1391
        %v1396 = vsel %vm537, %v1395, 0.0
        %v1397 = vsel %vm538, %v1394, 0.0
        %s1398 = scalar_lea.vmem %s3, 16
        %v1399 = vld [vmem:[%s1398] sm:$0xff]
        %v1401 = vsel %vm1241, %v1399, 0
        %1403 = vmatprep.subr.mxu0 %v1397
        %1404 = vmatpush1.msra.mxu0 %v1396
        %1405 = vmatprep.subr.mxu0 0.0
        %1406 = vmatpush1.msra.mxu0 0.0
        %1407 = vmatprep.subr.mxu0 0.0
        %1408 = vmatpush1.msra.mxu0 0.0
        %1409 = vmatprep.subr.mxu0 0.0
        %1410 = vmatpush1.msra.mxu0 0.0
        %1411 = vmatprep.subr.mxu0 0.0
        %1412 = vmatpush1.msra.mxu0 0.0
        %1413 = vmatprep.subr.mxu0 0.0
        %1414 = vmatpush1.msra.mxu0 0.0
        %1415 = vmatprep.subr.mxu0 0.0
        %1416 = vmatpush1.msra.mxu0 0.0
        %1417 = vmatprep.subr.mxu0 0.0
        %1418 = vmatpush1.msra.mxu0 0.0
        %1419 = vmatprep.subr.mxu0 0.0
        %1420 = vmatpush1.msra.mxu0 0.0
        %1421 = vmatprep.subr.mxu0 0.0
        %1422 = vmatpush1.msra.mxu0 0.0
        %1423 = vmatprep.subr.mxu0 0.0
        %1424 = vmatpush1.msra.mxu0 0.0
        %1425 = vmatprep.subr.mxu0 0.0
        %1426 = vmatpush1.msra.mxu0 0.0
        %1427 = vmatprep.subr.mxu0 0.0
        %1428 = vmatpush1.msra.mxu0 0.0
        %1429 = vmatprep.subr.mxu0 0.0
        %1430 = vmatpush1.msra.mxu0 0.0
        %1431 = vmatprep.subr.mxu0 0.0
        %1432 = vmatpush1.msra.mxu0 0.0
        %1433 = vmatprep.subr.mxu0 0.0
        %1434 = vmatpush1.msra.mxu0 0.0
        %1435 = vmatprep.subr.mxu0 0.0
        %1436 = vmatpush1.msra.mxu0 0.0
        %1437 = vmatprep.subr.mxu0 0.0
        %1438 = vmatpush1.msra.mxu0 0.0
        %1439 = vmatprep.subr.mxu0 0.0
        %1440 = vmatpush1.msra.mxu0 0.0
        %1441 = vmatprep.subr.mxu0 0.0
        %1442 = vmatpush1.msra.mxu0 0.0
        %1443 = vmatprep.subr.mxu0 0.0
        %1444 = vmatpush1.msra.mxu0 0.0
        %1445 = vmatprep.subr.mxu0 0.0
        %1446 = vmatpush1.msra.mxu0 0.0
        %1447 = vmatprep.subr.mxu0 0.0
        %1448 = vmatpush1.msra.mxu0 0.0
        %1449 = vmatprep.subr.mxu0 0.0
        %1450 = vmatpush1.msra.mxu0 0.0
        %1451 = vmatprep.subr.mxu0 0.0
        %1452 = vmatpush1.msra.mxu0 0.0
        %1453 = vmatprep.subr.mxu0 0.0
        %1454 = vmatpush1.msra.mxu0 0.0
        %1455 = vmatprep.subr.mxu0 0.0
        %1456 = vmatpush1.msra.mxu0 0.0
        %1457 = vmatprep.subr.mxu0 0.0
        %1458 = vmatpush1.msra.mxu0 0.0
        %1459 = vmatprep.subr.mxu0 0.0
        %1460 = vmatpush1.msra.mxu0 0.0
        %1461 = vmatprep.subr.mxu0 0.0
        %1462 = vmatpush1.msra.mxu0 0.0
        %1463 = vmatprep.subr.mxu0 0.0
        %1464 = vmatpush1.msra.mxu0 0.0
        %1465 = vmatprep.subr.mxu0 0.0
        %1466 = vmatpush1.msra.mxu0 0.0
        %1467 = vmatprep.mubr.f32.mxu0 0.0
        %1468 = vmatmul.mubr.f32.gmra.mrb[0].mxu0 %v1401
        %v1469 = vpop.f32.mrb[0].mxu0
        %v1470 = vadd.f32 0.0, %v1469
        %v1471 = vpop.f32.mrb[0].mxu0
        %v1472 = vadd.f32 0.0, %v1471
        %1473 = vdwg.mxu0
        %v1474 = vadd.f32 %v1386, %v1470
        %v1475 = vadd.f32 %v1388, %v1472
        %1476 = vrot.lane.b32.xlu0 %v1220, 1
        %v1477 = vpop.permute.xlu0 %1476
        %1478 = vrot.lane.b32.xlu0 %v1221, 1
        %v1479 = vpop.permute.xlu0 %1478
        %v1480 = vsel %vm629, %v1477, %v1479
        %v1481 = vsel %vm629, %v1479, %v1477
        %v1482 = vsel %vm637, %v1481, 0.0
        %v1483 = vsel %vm637, %v1480, 0.0
        %s1484 = scalar_lea.vmem %s3, 24
        %v1485 = vld [vmem:[%s1484] sm:$0xff]
        %v1487 = vsel %vm1241, %v1485, 0
        %1489 = vmatprep.subr.mxu0 %v1483
        %1490 = vmatpush1.msra.mxu0 %v1482
        %1491 = vmatprep.subr.mxu0 0.0
        %1492 = vmatpush1.msra.mxu0 0.0
        %1493 = vmatprep.subr.mxu0 0.0
        %1494 = vmatpush1.msra.mxu0 0.0
        %1495 = vmatprep.subr.mxu0 0.0
        %1496 = vmatpush1.msra.mxu0 0.0
        %1497 = vmatprep.subr.mxu0 0.0
        %1498 = vmatpush1.msra.mxu0 0.0
        %1499 = vmatprep.subr.mxu0 0.0
        %1500 = vmatpush1.msra.mxu0 0.0
        %1501 = vmatprep.subr.mxu0 0.0
        %1502 = vmatpush1.msra.mxu0 0.0
        %1503 = vmatprep.subr.mxu0 0.0
        %1504 = vmatpush1.msra.mxu0 0.0
        %1505 = vmatprep.subr.mxu0 0.0
        %1506 = vmatpush1.msra.mxu0 0.0
        %1507 = vmatprep.subr.mxu0 0.0
        %1508 = vmatpush1.msra.mxu0 0.0
        %1509 = vmatprep.subr.mxu0 0.0
        %1510 = vmatpush1.msra.mxu0 0.0
        %1511 = vmatprep.subr.mxu0 0.0
        %1512 = vmatpush1.msra.mxu0 0.0
        %1513 = vmatprep.subr.mxu0 0.0
        %1514 = vmatpush1.msra.mxu0 0.0
        %1515 = vmatprep.subr.mxu0 0.0
        %1516 = vmatpush1.msra.mxu0 0.0
        %1517 = vmatprep.subr.mxu0 0.0
        %1518 = vmatpush1.msra.mxu0 0.0
        %1519 = vmatprep.subr.mxu0 0.0
        %1520 = vmatpush1.msra.mxu0 0.0
        %1521 = vmatprep.subr.mxu0 0.0
        %1522 = vmatpush1.msra.mxu0 0.0
        %1523 = vmatprep.subr.mxu0 0.0
        %1524 = vmatpush1.msra.mxu0 0.0
        %1525 = vmatprep.subr.mxu0 0.0
        %1526 = vmatpush1.msra.mxu0 0.0
        %1527 = vmatprep.subr.mxu0 0.0
        %1528 = vmatpush1.msra.mxu0 0.0
        %1529 = vmatprep.subr.mxu0 0.0
        %1530 = vmatpush1.msra.mxu0 0.0
        %1531 = vmatprep.subr.mxu0 0.0
        %1532 = vmatpush1.msra.mxu0 0.0
        %1533 = vmatprep.subr.mxu0 0.0
        %1534 = vmatpush1.msra.mxu0 0.0
        %1535 = vmatprep.subr.mxu0 0.0
        %1536 = vmatpush1.msra.mxu0 0.0
        %1537 = vmatprep.subr.mxu0 0.0
        %1538 = vmatpush1.msra.mxu0 0.0
        %1539 = vmatprep.subr.mxu0 0.0
        %1540 = vmatpush1.msra.mxu0 0.0
        %1541 = vmatprep.subr.mxu0 0.0
        %1542 = vmatpush1.msra.mxu0 0.0
        %1543 = vmatprep.subr.mxu0 0.0
        %1544 = vmatpush1.msra.mxu0 0.0
        %1545 = vmatprep.subr.mxu0 0.0
        %1546 = vmatpush1.msra.mxu0 0.0
        %1547 = vmatprep.subr.mxu0 0.0
        %1548 = vmatpush1.msra.mxu0 0.0
        %1549 = vmatprep.subr.mxu0 0.0
        %1550 = vmatpush1.msra.mxu0 0.0
        %1551 = vmatprep.subr.mxu0 0.0
        %1552 = vmatpush1.msra.mxu0 0.0
        %1553 = vmatprep.mubr.f32.mxu0 0.0
        %1554 = vmatmul.mubr.f32.gmra.mrb[0].mxu0 %v1487
        %v1555 = vpop.f32.mrb[0].mxu0
        %v1556 = vadd.f32 0.0, %v1555
        %v1557 = vpop.f32.mrb[0].mxu0
        %v1558 = vadd.f32 0.0, %v1557
        %1559 = vdwg.mxu0
        %v1560 = vadd.f32 %v1474, %v1556
        %v1561 = vadd.f32 %v1475, %v1558
        %s1562 = scalar_lea.vmem %s3, 32
        %v1563 = vld [vmem:[%s1562] sm:$0xff]
        %v1565 = vsel %vm1241, %v1563, 0
        %1567 = vmatprep.subr.mxu0 %v1221
        %1568 = vmatpush1.msra.mxu0 %v1220
        %1569 = vmatprep.subr.mxu0 0.0
        %1570 = vmatpush1.msra.mxu0 0.0
        %1571 = vmatprep.subr.mxu0 0.0
        %1572 = vmatpush1.msra.mxu0 0.0
        %1573 = vmatprep.subr.mxu0 0.0
        %1574 = vmatpush1.msra.mxu0 0.0
        %1575 = vmatprep.subr.mxu0 0.0
        %1576 = vmatpush1.msra.mxu0 0.0
        %1577 = vmatprep.subr.mxu0 0.0
        %1578 = vmatpush1.msra.mxu0 0.0
        %1579 = vmatprep.subr.mxu0 0.0
        %1580 = vmatpush1.msra.mxu0 0.0
        %1581 = vmatprep.subr.mxu0 0.0
        %1582 = vmatpush1.msra.mxu0 0.0
        %1583 = vmatprep.subr.mxu0 0.0
        %1584 = vmatpush1.msra.mxu0 0.0
        %1585 = vmatprep.subr.mxu0 0.0
        %1586 = vmatpush1.msra.mxu0 0.0
        %1587 = vmatprep.subr.mxu0 0.0
        %1588 = vmatpush1.msra.mxu0 0.0
        %1589 = vmatprep.subr.mxu0 0.0
        %1590 = vmatpush1.msra.mxu0 0.0
        %1591 = vmatprep.subr.mxu0 0.0
        %1592 = vmatpush1.msra.mxu0 0.0
        %1593 = vmatprep.subr.mxu0 0.0
        %1594 = vmatpush1.msra.mxu0 0.0
        %1595 = vmatprep.subr.mxu0 0.0
        %1596 = vmatpush1.msra.mxu0 0.0
        %1597 = vmatprep.subr.mxu0 0.0
        %1598 = vmatpush1.msra.mxu0 0.0
        %1599 = vmatprep.subr.mxu0 0.0
        %1600 = vmatpush1.msra.mxu0 0.0
        %1601 = vmatprep.subr.mxu0 0.0
        %1602 = vmatpush1.msra.mxu0 0.0
        %1603 = vmatprep.subr.mxu0 0.0
        %1604 = vmatpush1.msra.mxu0 0.0
        %1605 = vmatprep.subr.mxu0 0.0
        %1606 = vmatpush1.msra.mxu0 0.0
        %1607 = vmatprep.subr.mxu0 0.0
        %1608 = vmatpush1.msra.mxu0 0.0
        %1609 = vmatprep.subr.mxu0 0.0
        %1610 = vmatpush1.msra.mxu0 0.0
        %1611 = vmatprep.subr.mxu0 0.0
        %1612 = vmatpush1.msra.mxu0 0.0
        %1613 = vmatprep.subr.mxu0 0.0
        %1614 = vmatpush1.msra.mxu0 0.0
        %1615 = vmatprep.subr.mxu0 0.0
        %1616 = vmatpush1.msra.mxu0 0.0
        %1617 = vmatprep.subr.mxu0 0.0
        %1618 = vmatpush1.msra.mxu0 0.0
        %1619 = vmatprep.subr.mxu0 0.0
        %1620 = vmatpush1.msra.mxu0 0.0
        %1621 = vmatprep.subr.mxu0 0.0
        %1622 = vmatpush1.msra.mxu0 0.0
        %1623 = vmatprep.subr.mxu0 0.0
        %1624 = vmatpush1.msra.mxu0 0.0
        %1625 = vmatprep.subr.mxu0 0.0
        %1626 = vmatpush1.msra.mxu0 0.0
        %1627 = vmatprep.subr.mxu0 0.0
        %1628 = vmatpush1.msra.mxu0 0.0
        %1629 = vmatprep.subr.mxu0 0.0
        %1630 = vmatpush1.msra.mxu0 0.0
        %1631 = vmatprep.mubr.f32.mxu0 0.0
        %1632 = vmatmul.mubr.f32.gmra.mrb[0].mxu0 %v1565
        %v1633 = vpop.f32.mrb[0].mxu0
        %v1634 = vadd.f32 0.0, %v1633
        %v1635 = vpop.f32.mrb[0].mxu0
        %v1636 = vadd.f32 0.0, %v1635
        %1637 = vdwg.mxu0
        %v1638 = vadd.f32 %v1560, %v1634
        %v1639 = vadd.f32 %v1561, %v1636
        %1640 = vrot.lane.b32.xlu0 %v1220, 127
        %v1641 = vpop.permute.xlu0 %1640
        %1642 = vrot.lane.b32.xlu0 %v1221, 127
        %v1643 = vpop.permute.xlu0 %1642
        %v1644 = vsel %vm810, %v1641, %v1643
        %v1645 = vsel %vm810, %v1643, %v1641
        %v1646 = vsel %vm818, %v1644, 0.0
        %v1647 = vsel %vm818, %v1645, 0.0
        %s1648 = scalar_lea.vmem %s3, 40
        %v1649 = vld [vmem:[%s1648] sm:$0xff]
        %v1651 = vsel %vm1241, %v1649, 0
        %1653 = vmatprep.subr.mxu0 %v1647
        %1654 = vmatpush1.msra.mxu0 %v1646
        %1655 = vmatprep.subr.mxu0 0.0
        %1656 = vmatpush1.msra.mxu0 0.0
        %1657 = vmatprep.subr.mxu0 0.0
        %1658 = vmatpush1.msra.mxu0 0.0
        %1659 = vmatprep.subr.mxu0 0.0
        %1660 = vmatpush1.msra.mxu0 0.0
        %1661 = vmatprep.subr.mxu0 0.0
        %1662 = vmatpush1.msra.mxu0 0.0
        %1663 = vmatprep.subr.mxu0 0.0
        %1664 = vmatpush1.msra.mxu0 0.0
        %1665 = vmatprep.subr.mxu0 0.0
        %1666 = vmatpush1.msra.mxu0 0.0
        %1667 = vmatprep.subr.mxu0 0.0
        %1668 = vmatpush1.msra.mxu0 0.0
        %1669 = vmatprep.subr.mxu0 0.0
        %1670 = vmatpush1.msra.mxu0 0.0
        %1671 = vmatprep.subr.mxu0 0.0
        %1672 = vmatpush1.msra.mxu0 0.0
        %1673 = vmatprep.subr.mxu0 0.0
        %1674 = vmatpush1.msra.mxu0 0.0
        %1675 = vmatprep.subr.mxu0 0.0
        %1676 = vmatpush1.msra.mxu0 0.0
        %1677 = vmatprep.subr.mxu0 0.0
        %1678 = vmatpush1.msra.mxu0 0.0
        %1679 = vmatprep.subr.mxu0 0.0
        %1680 = vmatpush1.msra.mxu0 0.0
        %1681 = vmatprep.subr.mxu0 0.0
        %1682 = vmatpush1.msra.mxu0 0.0
        %1683 = vmatprep.subr.mxu0 0.0
        %1684 = vmatpush1.msra.mxu0 0.0
        %1685 = vmatprep.subr.mxu0 0.0
        %1686 = vmatpush1.msra.mxu0 0.0
        %1687 = vmatprep.subr.mxu0 0.0
        %1688 = vmatpush1.msra.mxu0 0.0
        %1689 = vmatprep.subr.mxu0 0.0
        %1690 = vmatpush1.msra.mxu0 0.0
        %1691 = vmatprep.subr.mxu0 0.0
        %1692 = vmatpush1.msra.mxu0 0.0
        %1693 = vmatprep.subr.mxu0 0.0
        %1694 = vmatpush1.msra.mxu0 0.0
        %1695 = vmatprep.subr.mxu0 0.0
        %1696 = vmatpush1.msra.mxu0 0.0
        %1697 = vmatprep.subr.mxu0 0.0
        %1698 = vmatpush1.msra.mxu0 0.0
        %1699 = vmatprep.subr.mxu0 0.0
        %1700 = vmatpush1.msra.mxu0 0.0
        %1701 = vmatprep.subr.mxu0 0.0
        %1702 = vmatpush1.msra.mxu0 0.0
        %1703 = vmatprep.subr.mxu0 0.0
        %1704 = vmatpush1.msra.mxu0 0.0
        %1705 = vmatprep.subr.mxu0 0.0
        %1706 = vmatpush1.msra.mxu0 0.0
        %1707 = vmatprep.subr.mxu0 0.0
        %1708 = vmatpush1.msra.mxu0 0.0
        %1709 = vmatprep.subr.mxu0 0.0
        %1710 = vmatpush1.msra.mxu0 0.0
        %1711 = vmatprep.subr.mxu0 0.0
        %1712 = vmatpush1.msra.mxu0 0.0
        %1713 = vmatprep.subr.mxu0 0.0
        %1714 = vmatpush1.msra.mxu0 0.0
        %1715 = vmatprep.subr.mxu0 0.0
        %1716 = vmatpush1.msra.mxu0 0.0
        %1717 = vmatprep.mubr.f32.mxu0 0.0
        %1718 = vmatmul.mubr.f32.gmra.mrb[0].mxu0 %v1651
        %v1719 = vpop.f32.mrb[0].mxu0
        %v1720 = vadd.f32 0.0, %v1719
        %v1721 = vpop.f32.mrb[0].mxu0
        %v1722 = vadd.f32 0.0, %v1721
        %1723 = vdwg.mxu0
        %v1724 = vadd.f32 %v1638, %v1720
        %v1725 = vadd.f32 %v1639, %v1722
        %1726 = vrot.lane.b32.xlu0 %v1220, 113
        %v1727 = vpop.permute.xlu0 %1726
        %1728 = vrot.lane.b32.xlu0 %v1221, 113
        %v1729 = vpop.permute.xlu0 %1728
        %v1730 = vsel %vm909, %v1727, %v1729
        %v1731 = vsel %vm909, %v1729, %v1727
        %v1732 = vsel %vm922, %v1730, 0.0
        %v1733 = vsel %vm923, %v1731, 0.0
        %s1734 = scalar_lea.vmem %s3, 48
        %v1735 = vld [vmem:[%s1734] sm:$0xff]
        %v1737 = vsel %vm1241, %v1735, 0
        %1739 = vmatprep.subr.mxu0 %v1733
        %1740 = vmatpush1.msra.mxu0 %v1732
        %1741 = vmatprep.subr.mxu0 0.0
        %1742 = vmatpush1.msra.mxu0 0.0
        %1743 = vmatprep.subr.mxu0 0.0
        %1744 = vmatpush1.msra.mxu0 0.0
        %1745 = vmatprep.subr.mxu0 0.0
        %1746 = vmatpush1.msra.mxu0 0.0
        %1747 = vmatprep.subr.mxu0 0.0
        %1748 = vmatpush1.msra.mxu0 0.0
        %1749 = vmatprep.subr.mxu0 0.0
        %1750 = vmatpush1.msra.mxu0 0.0
        %1751 = vmatprep.subr.mxu0 0.0
        %1752 = vmatpush1.msra.mxu0 0.0
        %1753 = vmatprep.subr.mxu0 0.0
        %1754 = vmatpush1.msra.mxu0 0.0
        %1755 = vmatprep.subr.mxu0 0.0
        %1756 = vmatpush1.msra.mxu0 0.0
        %1757 = vmatprep.subr.mxu0 0.0
        %1758 = vmatpush1.msra.mxu0 0.0
        %1759 = vmatprep.subr.mxu0 0.0
        %1760 = vmatpush1.msra.mxu0 0.0
        %1761 = vmatprep.subr.mxu0 0.0
        %1762 = vmatpush1.msra.mxu0 0.0
        %1763 = vmatprep.subr.mxu0 0.0
        %1764 = vmatpush1.msra.mxu0 0.0
        %1765 = vmatprep.subr.mxu0 0.0
        %1766 = vmatpush1.msra.mxu0 0.0
        %1767 = vmatprep.subr.mxu0 0.0
        %1768 = vmatpush1.msra.mxu0 0.0
        %1769 = vmatprep.subr.mxu0 0.0
        %1770 = vmatpush1.msra.mxu0 0.0
        %1771 = vmatprep.subr.mxu0 0.0
        %1772 = vmatpush1.msra.mxu0 0.0
        %1773 = vmatprep.subr.mxu0 0.0
        %1774 = vmatpush1.msra.mxu0 0.0
        %1775 = vmatprep.subr.mxu0 0.0
        %1776 = vmatpush1.msra.mxu0 0.0
        %1777 = vmatprep.subr.mxu0 0.0
        %1778 = vmatpush1.msra.mxu0 0.0
        %1779 = vmatprep.subr.mxu0 0.0
        %1780 = vmatpush1.msra.mxu0 0.0
        %1781 = vmatprep.subr.mxu0 0.0
        %1782 = vmatpush1.msra.mxu0 0.0
        %1783 = vmatprep.subr.mxu0 0.0
        %1784 = vmatpush1.msra.mxu0 0.0
        %1785 = vmatprep.subr.mxu0 0.0
        %1786 = vmatpush1.msra.mxu0 0.0
        %1787 = vmatprep.subr.mxu0 0.0
        %1788 = vmatpush1.msra.mxu0 0.0
        %1789 = vmatprep.subr.mxu0 0.0
        %1790 = vmatpush1.msra.mxu0 0.0
        %1791 = vmatprep.subr.mxu0 0.0
        %1792 = vmatpush1.msra.mxu0 0.0
        %1793 = vmatprep.subr.mxu0 0.0
        %1794 = vmatpush1.msra.mxu0 0.0
        %1795 = vmatprep.subr.mxu0 0.0
        %1796 = vmatpush1.msra.mxu0 0.0
        %1797 = vmatprep.subr.mxu0 0.0
        %1798 = vmatpush1.msra.mxu0 0.0
        %1799 = vmatprep.subr.mxu0 0.0
        %1800 = vmatpush1.msra.mxu0 0.0
        %1801 = vmatprep.subr.mxu0 0.0
        %1802 = vmatpush1.msra.mxu0 0.0
        %1803 = vmatprep.mubr.f32.mxu0 0.0
        %1804 = vmatmul.mubr.f32.gmra.mrb[0].mxu0 %v1737
        %v1805 = vpop.f32.mrb[0].mxu0
        %v1806 = vadd.f32 0.0, %v1805
        %v1807 = vpop.f32.mrb[0].mxu0
        %v1808 = vadd.f32 0.0, %v1807
        %1809 = vdwg.mxu0
        %v1810 = vadd.f32 %v1724, %v1806
        %v1811 = vadd.f32 %v1725, %v1808
        %1812 = vrot.lane.b32.xlu0 %v1220, 112
        %v1813 = vpop.permute.xlu0 %1812
        %1814 = vrot.lane.b32.xlu0 %v1221, 112
        %v1815 = vpop.permute.xlu0 %1814
        %v1816 = vsel %vm1014, %v1813, %v1815
        %v1817 = vsel %vm1014, %v1815, %v1813
        %v1818 = vsel %vm1019, %v1816, 0.0
        %v1819 = vsel %vm1020, %v1817, 0.0
        %s1820 = scalar_lea.vmem %s3, 56
        %v1821 = vld [vmem:[%s1820] sm:$0xff]
        %v1823 = vsel %vm1241, %v1821, 0
        %1825 = vmatprep.subr.mxu0 %v1819
        %1826 = vmatpush1.msra.mxu0 %v1818
        %1827 = vmatprep.subr.mxu0 0.0
        %1828 = vmatpush1.msra.mxu0 0.0
        %1829 = vmatprep.subr.mxu0 0.0
        %1830 = vmatpush1.msra.mxu0 0.0
        %1831 = vmatprep.subr.mxu0 0.0
        %1832 = vmatpush1.msra.mxu0 0.0
        %1833 = vmatprep.subr.mxu0 0.0
        %1834 = vmatpush1.msra.mxu0 0.0
        %1835 = vmatprep.subr.mxu0 0.0
        %1836 = vmatpush1.msra.mxu0 0.0
        %1837 = vmatprep.subr.mxu0 0.0
        %1838 = vmatpush1.msra.mxu0 0.0
        %1839 = vmatprep.subr.mxu0 0.0
        %1840 = vmatpush1.msra.mxu0 0.0
        %1841 = vmatprep.subr.mxu0 0.0
        %1842 = vmatpush1.msra.mxu0 0.0
        %1843 = vmatprep.subr.mxu0 0.0
        %1844 = vmatpush1.msra.mxu0 0.0
        %1845 = vmatprep.subr.mxu0 0.0
        %1846 = vmatpush1.msra.mxu0 0.0
        %1847 = vmatprep.subr.mxu0 0.0
        %1848 = vmatpush1.msra.mxu0 0.0
        %1849 = vmatprep.subr.mxu0 0.0
        %1850 = vmatpush1.msra.mxu0 0.0
        %1851 = vmatprep.subr.mxu0 0.0
        %1852 = vmatpush1.msra.mxu0 0.0
        %1853 = vmatprep.subr.mxu0 0.0
        %1854 = vmatpush1.msra.mxu0 0.0
        %1855 = vmatprep.subr.mxu0 0.0
        %1856 = vmatpush1.msra.mxu0 0.0
        %1857 = vmatprep.subr.mxu0 0.0
        %1858 = vmatpush1.msra.mxu0 0.0
        %1859 = vmatprep.subr.mxu0 0.0
        %1860 = vmatpush1.msra.mxu0 0.0
        %1861 = vmatprep.subr.mxu0 0.0
        %1862 = vmatpush1.msra.mxu0 0.0
        %1863 = vmatprep.subr.mxu0 0.0
        %1864 = vmatpush1.msra.mxu0 0.0
        %1865 = vmatprep.subr.mxu0 0.0
        %1866 = vmatpush1.msra.mxu0 0.0
        %1867 = vmatprep.subr.mxu0 0.0
        %1868 = vmatpush1.msra.mxu0 0.0
        %1869 = vmatprep.subr.mxu0 0.0
        %1870 = vmatpush1.msra.mxu0 0.0
        %1871 = vmatprep.subr.mxu0 0.0
        %1872 = vmatpush1.msra.mxu0 0.0
        %1873 = vmatprep.subr.mxu0 0.0
        %1874 = vmatpush1.msra.mxu0 0.0
        %1875 = vmatprep.subr.mxu0 0.0
        %1876 = vmatpush1.msra.mxu0 0.0
        %1877 = vmatprep.subr.mxu0 0.0
        %1878 = vmatpush1.msra.mxu0 0.0
        %1879 = vmatprep.subr.mxu0 0.0
        %1880 = vmatpush1.msra.mxu0 0.0
        %1881 = vmatprep.subr.mxu0 0.0
        %1882 = vmatpush1.msra.mxu0 0.0
        %1883 = vmatprep.subr.mxu0 0.0
        %1884 = vmatpush1.msra.mxu0 0.0
        %1885 = vmatprep.subr.mxu0 0.0
        %1886 = vmatpush1.msra.mxu0 0.0
        %1887 = vmatprep.subr.mxu0 0.0
        %1888 = vmatpush1.msra.mxu0 0.0
        %1889 = vmatprep.mubr.f32.mxu0 0.0
        %1890 = vmatmul.mubr.f32.gmra.mrb[0].mxu0 %v1823
        %v1891 = vpop.f32.mrb[0].mxu0
        %v1892 = vadd.f32 0.0, %v1891
        %v1893 = vpop.f32.mrb[0].mxu0
        %v1894 = vadd.f32 0.0, %v1893
        %1895 = vdwg.mxu0
        %v1896 = vadd.f32 %v1810, %v1892
        %v1897 = vadd.f32 %v1811, %v1894
        %1898 = vrot.lane.b32.xlu0 %v1220, 111
        %v1899 = vpop.permute.xlu0 %1898
        %1900 = vrot.lane.b32.xlu0 %v1221, 111
        %v1901 = vpop.permute.xlu0 %1900
        %v1902 = vsel %vm1111, %v1899, %v1901
        %v1903 = vsel %vm1111, %v1901, %v1899
        %v1904 = vsel %vm1124, %v1902, 0.0
        %v1905 = vsel %vm1125, %v1903, 0.0
        %s1906 = scalar_lea.vmem %s3, 64
        %v1907 = vld [vmem:[%s1906] sm:$0xff]
        %v1909 = vsel %vm1241, %v1907, 0
        %1911 = vmatprep.subr.mxu0 %v1905
        %1912 = vmatpush1.msra.mxu0 %v1904
        %1913 = vmatprep.subr.mxu0 0.0
        %1914 = vmatpush1.msra.mxu0 0.0
        %1915 = vmatprep.subr.mxu0 0.0
        %1916 = vmatpush1.msra.mxu0 0.0
        %1917 = vmatprep.subr.mxu0 0.0
        %1918 = vmatpush1.msra.mxu0 0.0
        %1919 = vmatprep.subr.mxu0 0.0
        %1920 = vmatpush1.msra.mxu0 0.0
        %1921 = vmatprep.subr.mxu0 0.0
        %1922 = vmatpush1.msra.mxu0 0.0
        %1923 = vmatprep.subr.mxu0 0.0
        %1924 = vmatpush1.msra.mxu0 0.0
        %1925 = vmatprep.subr.mxu0 0.0
        %1926 = vmatpush1.msra.mxu0 0.0
        %1927 = vmatprep.subr.mxu0 0.0
        %1928 = vmatpush1.msra.mxu0 0.0
        %1929 = vmatprep.subr.mxu0 0.0
        %1930 = vmatpush1.msra.mxu0 0.0
        %1931 = vmatprep.subr.mxu0 0.0
        %1932 = vmatpush1.msra.mxu0 0.0
        %1933 = vmatprep.subr.mxu0 0.0
        %1934 = vmatpush1.msra.mxu0 0.0
        %1935 = vmatprep.subr.mxu0 0.0
        %1936 = vmatpush1.msra.mxu0 0.0
        %1937 = vmatprep.subr.mxu0 0.0
        %1938 = vmatpush1.msra.mxu0 0.0
        %1939 = vmatprep.subr.mxu0 0.0
        %1940 = vmatpush1.msra.mxu0 0.0
        %1941 = vmatprep.subr.mxu0 0.0
        %1942 = vmatpush1.msra.mxu0 0.0
        %1943 = vmatprep.subr.mxu0 0.0
        %1944 = vmatpush1.msra.mxu0 0.0
        %1945 = vmatprep.subr.mxu0 0.0
        %1946 = vmatpush1.msra.mxu0 0.0
        %1947 = vmatprep.subr.mxu0 0.0
        %1948 = vmatpush1.msra.mxu0 0.0
        %1949 = vmatprep.subr.mxu0 0.0
        %1950 = vmatpush1.msra.mxu0 0.0
        %1951 = vmatprep.subr.mxu0 0.0
        %1952 = vmatpush1.msra.mxu0 0.0
        %1953 = vmatprep.subr.mxu0 0.0
        %1954 = vmatpush1.msra.mxu0 0.0
        %1955 = vmatprep.subr.mxu0 0.0
        %1956 = vmatpush1.msra.mxu0 0.0
        %1957 = vmatprep.subr.mxu0 0.0
        %1958 = vmatpush1.msra.mxu0 0.0
        %1959 = vmatprep.subr.mxu0 0.0
        %1960 = vmatpush1.msra.mxu0 0.0
        %1961 = vmatprep.subr.mxu0 0.0
        %1962 = vmatpush1.msra.mxu0 0.0
        %1963 = vmatprep.subr.mxu0 0.0
        %1964 = vmatpush1.msra.mxu0 0.0
        %1965 = vmatprep.subr.mxu0 0.0
        %1966 = vmatpush1.msra.mxu0 0.0
        %1967 = vmatprep.subr.mxu0 0.0
        %1968 = vmatpush1.msra.mxu0 0.0
        %1969 = vmatprep.subr.mxu0 0.0
        %1970 = vmatpush1.msra.mxu0 0.0
        %1971 = vmatprep.subr.mxu0 0.0
        %1972 = vmatpush1.msra.mxu0 0.0
        %1973 = vmatprep.subr.mxu0 0.0
        %1974 = vmatpush1.msra.mxu0 0.0
        %1975 = vmatprep.mubr.f32.mxu0 0.0
        %1976 = vmatmul.mubr.f32.gmra.mrb[0].mxu0 %v1909
        %v1977 = vpop.f32.mrb[0].mxu0
        %v1978 = vadd.f32 0.0, %v1977
        %v1979 = vpop.f32.mrb[0].mxu0
        %v1980 = vadd.f32 0.0, %v1979
        %1981 = vdwg.mxu0
        %v1982 = vadd.f32 %v1896, %v1978
        %v1983 = vadd.f32 %v1897, %v1980
        %v1984 = vld [vmem:[%s4] sm:$0xff]
        %1986 = vset.pattern.permute.xlu0 0
        %1987 = vperm.xlu0 %1986, %v1984
        %v1988 = vpop.permute.xlu0 %1987
        %v1990 = vadd.f32 %v1982, %v1988
        %v1991 = vadd.f32 %v1983, %v1988
        %v1992 = vmax.f32 %v1990, 0.0
        %v1993 = vmax.f32 %v1991, 0.0
        %1994 = vst [vmem:[%s217] sm:$0xff] %v1992
        %1995 = vst [vmem:[%s217 + $0x8] sm:$0xff] %v1993
        %s1996 = sand.u32 %s137, 1
        %s1997 = scalar_lea.sflag [#allocation3], %s1996
        %s1998 = sand.u32 %s137, 1
        %s1999 = smul.addr %s1998, 16
        %s2000 = scalar_lea.vmem [#allocation2], %s1999
        // Predicated region
        $region41: #{tpu_custom_call.1} parent=39 // pred_check
          %p2001 = pneg %p147
        $region42: #{tpu_custom_call.1} parent=39 // pred_check_branch
          %2003 = sbr.rel (%p2001) target = $region44
        $region43: #{tpu_custom_call.1} parent=39 // pred_region
          %s2005 = ssub.s32 256, 256
          %2006 = vsyncadd %s1997, %s2005
          %s2007 = smul.addr %s19, 2
          %s2008 = smul.addr %s2007, 128
          %s2009 = scalar_lea.hbm %s5, %s2008
          %s2011 = sshll.u32 %s2000, 4
          %s2012 = int_to_ptr.vmem [resolvable:$true] %s2011
          %2014 = dma.vmem_to_hbm [thread:$0]  %s2012, 256, %s2009, %s1997
        $region44: #{tpu_custom_call.1} parent=39 // pred_fallthru
          _
      $region40: #{tpu_custom_call.1} parent=5 // pred_fallthru
        _
      %p2015 = scmp.le.s32.totalorder 2, %s14
      // Predicated region
      $region45: #{tpu_custom_call.1} parent=5 // pred_check
        %p2016 = pneg %p2015
      $region46: #{tpu_custom_call.1} parent=5 // pred_check_branch
        %2018 = sbr.rel (%p2016) target = $region48
      $region47: #{tpu_custom_call.1} parent=5 // pred_region
        %s2019 = ssub.s32 %s14, 2
        // Predicated region
        $region49: #{tpu_custom_call.1} parent=47 // pred_check
          %p2020 = pneg %p153
        $region50: #{tpu_custom_call.1} parent=47 // pred_check_branch
          %2022 = sbr.rel (%p2020) target = $region52
        $region51: #{tpu_custom_call.1} parent=47 // pred_region
          %s2023 = sand.u32 %s138, 1
          %s2024 = scalar_lea.sflag [#allocation3], %s2023
          %s2025 = sand.u32 %s138, 1
          %s2026 = smul.addr %s2025, 16
          %s2027 = scalar_lea.vmem [#allocation2], %s2026
          %2028 = dma.done %s2024, 256
        $region52: #{tpu_custom_call.1} parent=47 // pred_fallthru
          _
      $region48: #{tpu_custom_call.1} parent=5 // pred_fallthru
        _
    $region6: #{tpu_custom_call.1} parent=1 // loop_footer
      %s18 = sadd.s32 1, %s14
    $region7: #{tpu_custom_call.1} parent=1 // loop_footer_branch
      %13 = sbr.rel target = $region3
    $region8: #{tpu_custom_call.1} parent=1 // loop_exit
      _
    %2029 = vsyncpa [#allocation3], 1
    %s2030 = scalar_lea.sflag [#allocation3], 1
    %2031 = vsyncpa %s2030, 1

</llo_original>
